<compile_context>
chip_gen: v6e
topology: v6e:2x2x1
jax: 0.10.0
libtpu: 0.0.40
codegen_flags: <defaults>
</compile_context>

<pallas_src>
import functools

import jax
import jax.numpy as jnp
from jax import lax
from jax.experimental import pallas as pl
from jax.experimental.pallas import tpu as pltpu

NUM_MEAN = 1826.6844940968194
NUM_STD = 2516.8905096993817
NORM_EPS = 1e-12   # F.normalize default eps
SMALL_W = 8        # packed small features: color(3) | pos(3) | num(1) | 1.0


def _l2norm_ref(x):
    n = jnp.sqrt(jnp.sum(x * x, axis=-1, keepdims=True))
    return x / jnp.maximum(n, NORM_EPS)


def object_encoder_kernel(xs_ref, pn_ref, ws_ref, wp_ref, w2_ref, wm_ref,
                          g_ref, b_ref, out_ref, *, hidden, embed_dim):
    H3 = 3 * hidden
    E = embed_dim

    # ---- fused layer-1: color/pos/num first Linear + mlp_pointnet as two
    # accumulating MXU calls; layer-1 biases folded into ws row 7 (x lane 7 == 1).
    h = jnp.dot(xs_ref[...], ws_ref[...], preferred_element_type=jnp.float32)
    h = h + jnp.dot(pn_ref[...], wp_ref[...], preferred_element_type=jnp.float32)

    # ReLU on the three encoder hidden blocks only; obj_feat lanes pass through.
    lane = lax.broadcasted_iota(jnp.int32, h.shape, 1)
    passthrough = (lane >= H3) & (lane < H3 + E)
    h = jnp.where(passthrough, h, jnp.maximum(h, 0.0))

    # ---- fused layer-2: block-diag(color_l2|pos_l2|num_l2) + identity pass-
    # through of obj_feat + biases (via the constant-1 column from layer-1).
    # Result: pre-norm [class | color | pos | num], 4E contiguous lanes.
    pre = jnp.dot(h.astype(w2_ref.dtype), w2_ref[...],
                  preferred_element_type=jnp.float32)

    # ---- per-32-lane-group L2 normalization (== F.normalize(dim=-1) per feature):
    # group sum-of-squares rides the idle MXU via a block-diag-of-ones matmul,
    # rsqrt on the EUP; no lane-offset slices, no XLU reduce/broadcast.
    ss = jnp.dot(pre * pre, g_ref[...], preferred_element_type=jnp.float32)
    normed = pre * lax.rsqrt(jnp.maximum(ss, NORM_EPS * NORM_EPS))

    # ---- augmented merge: one [T,128] @ [128,128] producing
    # [merged | norm(obj_feat) | norm(color_emb) | norm(pos_emb)] lane-dense.
    out = jnp.dot(normed.astype(wm_ref.dtype), wm_ref[...],
                  preferred_element_type=jnp.float32) + b_ref[...]
    out_ref[...] = out.astype(out_ref.dtype)


def pack_params(params, matmul_dtype=jnp.float32):
    """Pack the 9 Linear layers into 4 weight slabs + 1 bias row + group matrix.

    - layer-1 biases ride row 7 of `ws` (the constant-1 lane of x_small); the
      (num - mean)/std normalization is folded exactly:
        ((n-mean)/std) @ W + b == n @ (W/std) + (b - (mean/std) * W).
    - layer-1 also emits a constant-1 output column so layer-2 biases become a
      weight row; layer-2 gets an identity block passing obj_feat through.
    - the merge weight is augmented with identity selectors so the kernel's
      output is [merged | norm(class) | norm(color) | norm(pos)] from one matmul.
    """
    wpn, bpn = params["wpn"], params["bpn"]
    wc1, bc1 = params["wc1"], params["bc1"]
    wc2, bc2 = params["wc2"], params["bc2"]
    wp1, bp1 = params["wp1"], params["bp1"]
    wp2, bp2 = params["wp2"], params["bp2"]
    wn1, bn1 = params["wn1"], params["bn1"]
    wn2, bn2 = params["wn2"], params["bn2"]
    wm, bm = params["wm"], params["bm"]

    pn_dim, E = wpn.shape
    H = wc1.shape[1]
    H3 = 3 * H
    ONE_COL = H3 + E                            # layer-1 constant-1 output column
    L1 = ((ONE_COL + 1 + 127) // 128) * 128     # fused layer-1 output width (256)

    eye = jnp.eye(E, dtype=jnp.float32)

    # exact affine fold of the num normalization
    wn1_f = wn1 / NUM_STD
    bn1_f = bn1 - (NUM_MEAN / NUM_STD) * wn1

    # fused layer-1, small-feature half: rows [color(3) | pos(3) | num(1) | one(1)]
    ws = jnp.zeros((SMALL_W, L1), jnp.float32)
    ws = ws.at[0:3, 0:H].set(wc1)
    ws = ws.at[3:6, H:2 * H].set(wp1)
    ws = ws.at[6:7, 2 * H:H3].set(wn1_f)
    ws = ws.at[7:8, 0:H].set(bc1)               # layer-1 biases (x lane 7 == 1.0)
    ws = ws.at[7:8, H:2 * H].set(bp1)
    ws = ws.at[7:8, 2 * H:H3].set(bn1_f)
    ws = ws.at[7:8, H3:H3 + E].set(bpn)
    ws = ws.at[7, ONE_COL].set(1.0)             # constant-1 column -> layer-2 bias row

    # fused layer-1, pointnet half
    wp = jnp.zeros((pn_dim, L1), jnp.float32)
    wp = wp.at[:, H3:H3 + E].set(wpn)

    # fused layer-2 (+ obj_feat identity, + bias row at the constant-1 column)
    w2 = jnp.zeros((L1, 4 * E), jnp.float32)
    w2 = w2.at[0:H, E:2 * E].set(wc2)
    w2 = w2.at[H:2 * H, 2 * E:3 * E].set(wp2)
    w2 = w2.at[2 * H:H3, 3 * E:4 * E].set(wn2)
    w2 = w2.at[H3:H3 + E, 0:E].set(eye)
    w2 = w2.at[ONE_COL:ONE_COL + 1, E:2 * E].set(bc2)
    w2 = w2.at[ONE_COL:ONE_COL + 1, 2 * E:3 * E].set(bp2)
    w2 = w2.at[ONE_COL:ONE_COL + 1, 3 * E:4 * E].set(bn2)

    # augmented merge: [mlp_merge | select(class) | select(color) | select(pos)]
    wma = jnp.zeros((4 * E, 4 * E), jnp.float32)
    wma = wma.at[:, 0:E].set(wm)
    wma = wma.at[0:E, E:2 * E].set(eye)
    wma = wma.at[E:2 * E, 2 * E:3 * E].set(eye)
    wma = wma.at[2 * E:3 * E, 3 * E:4 * E].set(eye)

    # merge bias, lane-aligned full-width row
    b_out = jnp.zeros((1, 4 * E), jnp.float32).at[:, 0:E].set(bm)

    # block-diag-of-ones for per-32-lane-group sum-of-squares (kept f32)
    grp = jnp.arange(4 * E) // E
    g = (grp[:, None] == grp[None, :]).astype(jnp.float32)

    dt = matmul_dtype
    return ws.astype(dt), wp.astype(dt), w2.astype(dt), wma.astype(dt), g, b_out


def object_encoder_forward(pointnet_feats, colors, positions, num_points, params,
                           *, row_tile=1024, matmul_dtype=jnp.float32):
    """Pallas-backed forward. Returns (embeddings, pos_positions,
    normalized_object_features, normalized_color_embedding)."""
    n_obj, pn_dim = pointnet_feats.shape
    E = params["wm"].shape[1]
    H = params["wc1"].shape[1]

    ws, wp, w2, wma, g, b_out = pack_params(params, matmul_dtype)
    L1 = ws.shape[1]

    # Tile sizing: multiple of 8; keep the grid >= 2 tiles when possible so
    # v7x's two TensorCores both get work (measured no-op on v5e/v6e).
    max_tile = max(8, (((n_obj + 1) // 2) + 7) // 8 * 8)
    row_tile = max(8, min(row_tile, max_tile))
    n_pad = pl.cdiv(n_obj, row_tile) * row_tile

    # Two input slabs — no full-width HBM repack of pointnet_feats.
    # x_small = [color | pos | num | 1.0]; the 1.0 lane drives bias folding.
    x_small = jnp.concatenate(
        [colors, positions, num_points.astype(jnp.float32),
         jnp.ones((n_obj, 1), jnp.float32)], axis=1)
    pn = pointnet_feats
    if n_pad != n_obj:
        # TODO(synk): drop this pad (rely on Pallas boundary-block masking) once
        # verified on all target generations; padded zero rows are harmless here.
        x_small = jnp.pad(x_small, ((0, n_pad - n_obj), (0, 0)))
        pn = jnp.pad(pn, ((0, n_pad - n_obj), (0, 0)))
    x_small = x_small.astype(matmul_dtype)
    pn = pn.astype(matmul_dtype)

    kernel = functools.partial(object_encoder_kernel, hidden=H, embed_dim=E)

    cp = dict(dimension_semantics=("parallel",))
    if row_tile >= 4096:
        cp["vmem_limit_bytes"] = 64 * 1024 * 1024   # headroom for big tiles (v5e scoped default is 16 MiB)

    fn = pl.pallas_call(
        kernel,
        out_shape=jax.ShapeDtypeStruct((n_pad, 4 * E), jnp.float32),
        grid_spec=pltpu.PrefetchScalarGridSpec(
            num_scalar_prefetch=0,
            grid=(n_pad // row_tile,),
            in_specs=[
                pl.BlockSpec((row_tile, SMALL_W), lambda i: (i, 0)),   # x_small
                pl.BlockSpec((row_tile, pn_dim), lambda i: (i, 0)),    # pointnet feats
                pl.BlockSpec((SMALL_W, L1), lambda i: (0, 0)),         # fused layer-1 (small)
                pl.BlockSpec((pn_dim, L1), lambda i: (0, 0)),          # fused layer-1 (pointnet)
                pl.BlockSpec((L1, 4 * E), lambda i: (0, 0)),           # fused layer-2 (+id, +bias)
                pl.BlockSpec((4 * E, 4 * E), lambda i: (0, 0)),        # augmented merge
                pl.BlockSpec((4 * E, 4 * E), lambda i: (0, 0)),        # group-sum ones blocks
                pl.BlockSpec((1, 4 * E), lambda i: (0, 0)),            # merge bias row
            ],
            out_specs=pl.BlockSpec((row_tile, 4 * E), lambda i: (i, 0)),
        ),
        compiler_params=pltpu.CompilerParams(**cp),
    )
    out = fn(x_small, pn, ws, wp, w2, wma, g, b_out)

    emb = out[:n_obj, 0:E]               # mlp_merge output
    objfeat_n = out[:n_obj, E:2 * E]     # F.normalize(object_features)
    colemb_n = out[:n_obj, 2 * E:3 * E]  # F.normalize(color_embedding)
    return emb, positions, objfeat_n, colemb_n


def reference_forward(pointnet_feats, colors, positions, num_points, params):
    """Pure-JAX reference mirroring the PyTorch forward for the chosen config."""
    obj_feat = pointnet_feats @ params["wpn"] + params["bpn"]
    col = jnp.maximum(colors @ params["wc1"] + params["bc1"], 0.0) @ params["wc2"] + params["bc2"]
    pos = jnp.maximum(positions @ params["wp1"] + params["bp1"], 0.0) @ params["wp2"] + params["bp2"]
    num = (num_points - NUM_MEAN) / NUM_STD
    nm = jnp.maximum(num @ params["wn1"] + params["bn1"], 0.0) @ params["wn2"] + params["bn2"]
    e = [_l2norm_ref(obj_feat), _l2norm_ref(col), _l2norm_ref(pos), _l2norm_ref(nm)]
    merged = jnp.concatenate(e, axis=-1) @ params["wm"] + params["bm"]
    return merged, positions, e[0], e[1]


def init_params(key, embed_dim, pointnet_dim, hidden=64):
    def linear(k, fan_in, fan_out):
        kw, kb = jax.random.split(k)
        bound = 1.0 / jnp.sqrt(fan_in)
        w = jax.random.uniform(kw, (fan_in, fan_out), jnp.float32, -bound, bound)
        b = jax.random.uniform(kb, (1, fan_out), jnp.float32, -bound, bound)
        return w, b

    keys = jax.random.split(key, 8)
    p = {}
    p["wpn"], p["bpn"] = linear(keys[0], pointnet_dim, embed_dim)     # mlp_pointnet
    p["wc1"], p["bc1"] = linear(keys[1], 3, hidden)                   # color_encoder
    p["wc2"], p["bc2"] = linear(keys[2], hidden, embed_dim)
    p["wp1"], p["bp1"] = linear(keys[3], 3, hidden)                   # pos_encoder
    p["wp2"], p["bp2"] = linear(keys[4], hidden, embed_dim)
    p["wn1"], p["bn1"] = linear(keys[5], 1, hidden)                   # num_encoder
    p["wn2"], p["bn2"] = linear(keys[6], hidden, embed_dim)
    p["wm"], p["bm"] = linear(keys[7], 4 * embed_dim, embed_dim)      # mlp_merge
    return p


if __name__ == "__main__":
    embed_dim = 32
    pointnet_dim = 64    # pointnet.dim2 (features2 width)
    n_objects = 500      # objects flattened across the batch (non-multiple: exercises padding)

    key = jax.random.PRNGKey(0)
    k_param, k_feat, k_col, k_pos, k_num = jax.random.split(key, 5)

    params = init_params(k_param, embed_dim, pointnet_dim)

    pointnet_feats = jax.random.normal(k_feat, (n_objects, pointnet_dim), jnp.float32)
    colors = jax.random.uniform(k_col, (n_objects, 3), jnp.float32)            # rgb in [0,1]
    positions = jax.random.normal(k_pos, (n_objects, 3), jnp.float32) * 10.0   # object centers
    num_points = jax.random.randint(k_num, (n_objects, 1), 16, 8192).astype(jnp.float32)

    out = object_encoder_forward(pointnet_feats, colors, positions, num_points, params)
    out = jax.block_until_ready(out)

    ref = reference_forward(pointnet_feats, colors, positions, num_points, params)
    for o, r in zip(out, ref):
        assert o.shape == r.shape, f"shape mismatch {o.shape} vs {r.shape}"
        assert jnp.allclose(o, r, atol=3e-4, rtol=3e-4), "mismatch vs reference"

    print("KERNEL_OK")
</pallas_src>

<mosaic_0001>
module attributes {stable_mosaic.version = 11 : i64} {
  func.func @object_encoder_kernel(%arg0: i32, %arg1: memref<256x8xf32, #tpu.memory_space<vmem>>, %arg2: memref<256x64xf32, #tpu.memory_space<vmem>>, %arg3: memref<8x256xf32, #tpu.memory_space<vmem>>, %arg4: memref<64x256xf32, #tpu.memory_space<vmem>>, %arg5: memref<256x128xf32, #tpu.memory_space<vmem>>, %arg6: memref<128x128xf32, #tpu.memory_space<vmem>>, %arg7: memref<128x128xf32, #tpu.memory_space<vmem>>, %arg8: memref<1x128xf32, #tpu.memory_space<vmem>>, %arg9: memref<256x128xf32, #tpu.memory_space<vmem>>) attributes {dimension_semantics = [#tpu.dimension_semantics<parallel>], iteration_bounds = array<i64: 2>, scalar_prefetch = 0 : i64, scratch_operands = 0 : i64, tpu.core_type = #tpu.core_type<tc>, window_params = [{transform_indices = @transform_0, window_bounds = array<i64: 256, 8>}, {transform_indices = @transform_1, window_bounds = array<i64: 256, 64>}, {pipeline_mode = #tpu.pipeline_mode<synchronous>, transform_indices = @transform_2, window_bounds = array<i64: 8, 256>}, {pipeline_mode = #tpu.pipeline_mode<synchronous>, transform_indices = @transform_3, window_bounds = array<i64: 64, 256>}, {pipeline_mode = #tpu.pipeline_mode<synchronous>, transform_indices = @transform_4, window_bounds = array<i64: 256, 128>}, {pipeline_mode = #tpu.pipeline_mode<synchronous>, transform_indices = @transform_5, window_bounds = array<i64: 128, 128>}, {pipeline_mode = #tpu.pipeline_mode<synchronous>, transform_indices = @transform_6, window_bounds = array<i64: 128, 128>}, {pipeline_mode = #tpu.pipeline_mode<synchronous>, transform_indices = @transform_7, window_bounds = array<i64: 1, 128>}, {transform_indices = @transform_8, window_bounds = array<i64: 256, 128>}]} {
    %c0 = arith.constant 0 : index
    %c0_0 = arith.constant 0 : index
    %0 = vector.load %arg1[%c0, %c0_0] : memref<256x8xf32, #tpu.memory_space<vmem>>, vector<256x8xf32>
    %c0_1 = arith.constant 0 : index
    %c0_2 = arith.constant 0 : index
    %1 = vector.load %arg3[%c0_1, %c0_2] : memref<8x256xf32, #tpu.memory_space<vmem>>, vector<8x256xf32>
    %cst = arith.constant dense<0.000000e+00> : vector<256x256xf32>
    %2 = tpu.matmul %0, %1, %cst {dimension_numbers = #tpu.dot_dimension_numbers<[1], [0], [0], [1], [0, 0, 1, 1], [], []>} : vector<256x8xf32>, vector<8x256xf32>, vector<256x256xf32> -> vector<256x256xf32>
    %c0_3 = arith.constant 0 : index
    %c0_4 = arith.constant 0 : index
    %3 = vector.load %arg2[%c0_3, %c0_4] : memref<256x64xf32, #tpu.memory_space<vmem>>, vector<256x64xf32>
    %c0_5 = arith.constant 0 : index
    %c0_6 = arith.constant 0 : index
    %4 = vector.load %arg4[%c0_5, %c0_6] : memref<64x256xf32, #tpu.memory_space<vmem>>, vector<64x256xf32>
    %cst_7 = arith.constant dense<0.000000e+00> : vector<256x256xf32>
    %5 = tpu.matmul %3, %4, %cst_7 {dimension_numbers = #tpu.dot_dimension_numbers<[1], [0], [0], [1], [0, 0, 1, 1], [], []>} : vector<256x64xf32>, vector<64x256xf32>, vector<256x256xf32> -> vector<256x256xf32>
    %6 = arith.addf %2, %5 : vector<256x256xf32>
    %7 = tpu.iota {dimensions = array<i32: 1>} : vector<256x256xi32>
    %c192_i32 = arith.constant 192 : i32
    %8 = vector.broadcast %c192_i32 : i32 to vector<256x256xi32>
    %9 = arith.cmpi sge, %7, %8 : vector<256x256xi32>
    %c224_i32 = arith.constant 224 : i32
    %10 = vector.broadcast %c224_i32 : i32 to vector<256x256xi32>
    %11 = arith.cmpi slt, %7, %10 : vector<256x256xi32>
    %12 = arith.andi %9, %11 : vector<256x256xi1>
    %cst_8 = arith.constant 0.000000e+00 : f32
    %13 = vector.broadcast %cst_8 : f32 to vector<256x256xf32>
    %14 = arith.maximumf %6, %13 : vector<256x256xf32>
    %15 = arith.select %12, %6, %14 : vector<256x256xi1>, vector<256x256xf32>
    %c0_9 = arith.constant 0 : index
    %c0_10 = arith.constant 0 : index
    %16 = vector.load %arg5[%c0_9, %c0_10] : memref<256x128xf32, #tpu.memory_space<vmem>>, vector<256x128xf32>
    %cst_11 = arith.constant dense<0.000000e+00> : vector<256x128xf32>
    %17 = tpu.matmul %15, %16, %cst_11 {dimension_numbers = #tpu.dot_dimension_numbers<[1], [0], [0], [1], [0, 0, 1, 1], [], []>} : vector<256x256xf32>, vector<256x128xf32>, vector<256x128xf32> -> vector<256x128xf32>
    %18 = arith.mulf %17, %17 : vector<256x128xf32>
    %c0_12 = arith.constant 0 : index
    %c0_13 = arith.constant 0 : index
    %19 = vector.load %arg7[%c0_12, %c0_13] : memref<128x128xf32, #tpu.memory_space<vmem>>, vector<128x128xf32>
    %cst_14 = arith.constant dense<0.000000e+00> : vector<256x128xf32>
    %20 = tpu.matmul %18, %19, %cst_14 {dimension_numbers = #tpu.dot_dimension_numbers<[1], [0], [0], [1], [0, 0, 1, 1], [], []>} : vector<256x128xf32>, vector<128x128xf32>, vector<256x128xf32> -> vector<256x128xf32>
    %cst_15 = arith.constant 1.000000e-24 : f32
    %21 = vector.broadcast %cst_15 : f32 to vector<256x128xf32>
    %22 = arith.maximumf %20, %21 : vector<256x128xf32>
    %23 = math.rsqrt %22 : vector<256x128xf32>
    %24 = arith.mulf %17, %23 : vector<256x128xf32>
    %c0_16 = arith.constant 0 : index
    %c0_17 = arith.constant 0 : index
    %25 = vector.load %arg6[%c0_16, %c0_17] : memref<128x128xf32, #tpu.memory_space<vmem>>, vector<128x128xf32>
    %cst_18 = arith.constant dense<0.000000e+00> : vector<256x128xf32>
    %26 = tpu.matmul %24, %25, %cst_18 {dimension_numbers = #tpu.dot_dimension_numbers<[1], [0], [0], [1], [0, 0, 1, 1], [], []>} : vector<256x128xf32>, vector<128x128xf32>, vector<256x128xf32> -> vector<256x128xf32>
    %c0_19 = arith.constant 0 : index
    %c0_20 = arith.constant 0 : index
    %27 = vector.load %arg8[%c0_19, %c0_20] : memref<1x128xf32, #tpu.memory_space<vmem>>, vector<1x128xf32>
    %28 = vector.broadcast %27 : vector<1x128xf32> to vector<256x128xf32>
    %29 = arith.addf %26, %28 : vector<256x128xf32>
    %c0_21 = arith.constant 0 : index
    %c0_22 = arith.constant 0 : index
    %30 = vector.load %arg9[%c0_21, %c0_22] : memref<256x128xf32, #tpu.memory_space<vmem>>, vector<256x128xf32>
    tpu.vector_store %arg9[%c0_21, %c0_22], %29 {strides = array<i32>} : memref<256x128xf32, #tpu.memory_space<vmem>>, vector<256x128xf32>,
    return
  }
  func.func @transform_0(%arg0: i32) -> (i32, i32) {
    %c0_i32 = arith.constant 0 : i32
    %c0_i32_0 = arith.constant 0 : i32
    return %arg0, %c0_i32 : i32, i32
  }
  func.func @transform_1(%arg0: i32) -> (i32, i32) {
    %c0_i32 = arith.constant 0 : i32
    %c0_i32_0 = arith.constant 0 : i32
    return %arg0, %c0_i32 : i32, i32
  }
  func.func @transform_2(%arg0: i32) -> (i32, i32) {
    %c0_i32 = arith.constant 0 : i32
    %c0_i32_0 = arith.constant 0 : i32
    %c0_i32_1 = arith.constant 0 : i32
    return %c0_i32, %c0_i32_0 : i32, i32
  }
  func.func @transform_3(%arg0: i32) -> (i32, i32) {
    %c0_i32 = arith.constant 0 : i32
    %c0_i32_0 = arith.constant 0 : i32
    %c0_i32_1 = arith.constant 0 : i32
    return %c0_i32, %c0_i32_0 : i32, i32
  }
  func.func @transform_4(%arg0: i32) -> (i32, i32) {
    %c0_i32 = arith.constant 0 : i32
    %c0_i32_0 = arith.constant 0 : i32
    %c0_i32_1 = arith.constant 0 : i32
    return %c0_i32, %c0_i32_0 : i32, i32
  }
  func.func @transform_5(%arg0: i32) -> (i32, i32) {
    %c0_i32 = arith.constant 0 : i32
    %c0_i32_0 = arith.constant 0 : i32
    %c0_i32_1 = arith.constant 0 : i32
    return %c0_i32, %c0_i32_0 : i32, i32
  }
  func.func @transform_6(%arg0: i32) -> (i32, i32) {
    %c0_i32 = arith.constant 0 : i32
    %c0_i32_0 = arith.constant 0 : i32
    %c0_i32_1 = arith.constant 0 : i32
    return %c0_i32, %c0_i32_0 : i32, i32
  }
  func.func @transform_7(%arg0: i32) -> (i32, i32) {
    %c0_i32 = arith.constant 0 : i32
    %c0_i32_0 = arith.constant 0 : i32
    %c0_i32_1 = arith.constant 0 : i32
    return %c0_i32, %c0_i32_0 : i32, i32
  }
  func.func @transform_8(%arg0: i32) -> (i32, i32) {
    %c0_i32 = arith.constant 0 : i32
    %c0_i32_0 = arith.constant 0 : i32
    return %arg0, %c0_i32 : i32, i32
  }
}

</mosaic_0001>

<llo_original>
// kernel: tpu_custom_call.1
$region0: #{tpu_custom_call.1}
  #allocation0 [shape = 'u32[]', space=smem, size = 0x4, offset = 0x4, fixed_abs, tag = 'smem constant byte address 0x4 - core index']
  #allocation1 [shape = 'u32[144,128]{1,0:T(1,128)}', space=vmem, size = 0x12000, scoped, tag = 'internal scratch']
  %s0 = inlined_call_operand.vmem [shape: f32[512,8], index: 0, kind: input, shape index: {}]
  %s1 = inlined_call_operand.vmem [shape: f32[512,64], index: 1, kind: input, shape index: {}]
  %s2 = inlined_call_operand.vmem [shape: f32[8,256], index: 2, kind: input, shape index: {}]
  %s3 = inlined_call_operand.vmem [shape: f32[64,256], index: 3, kind: input, shape index: {}]
  %s4 = inlined_call_operand.vmem [shape: f32[256,128], index: 4, kind: input, shape index: {}]
  %s5 = inlined_call_operand.vmem [shape: f32[128,128], index: 5, kind: input, shape index: {}]
  %s6 = inlined_call_operand.vmem [shape: f32[128,128], index: 6, kind: input, shape index: {}]
  %s7 = inlined_call_operand.vmem [shape: f32[1,128], index: 7, kind: input, shape index: {}]
  %s8 = inlined_call_operand.hbm [shape: f32[512,128], index: 8, kind: output, shape index: {}]
  %s9 = sld [smem:[#allocation0]]
  $region65: #{tpu_custom_call.1} parent=0
    _
  %s11 = ssub.s32 1, %s9
  %s12 = scalar_select 0, %s11, %s9
  $region1: #{tpu_custom_call.1} parent=0
    #allocation2 [shape = 'u8[262144]{0}', space=vmem, size = 0x40000, scoped, tag = 'output window, operand 0']
    #allocation3 [shape = 's32[2]{0}', space=sflag, size = 0x8, scoped, tag = 'scoped memory for tpu_custom_call.1']
    %13 = vsyncpa [#allocation3], 0
    %s14 = scalar_lea.sflag [#allocation3], 1
    %15 = vsyncpa %s14, 0
    loop: start=0, step=1, limit=4
    $region2: #{tpu_custom_call.1} parent=1 // loop_pre_header
      _
    $region3: #{tpu_custom_call.1} parent=1 // loop_header
      %s17 = sphi 0, %s21
      %p18 = scmp.ge.s32.totalorder %s17, 4
      %s27 = sphi 0, %s29
      %s30 = sphi 0, %s27
      %s31 = sphi 0, %s30
      %s47 = sphi 0, %s31
      %s53 = sphi 0, %s55
      %s56 = sphi 0, %s53
      %s57 = sphi 0, %s56
      %s73 = sphi 0, %s57
      %s77 = sphi 0, %s77
      %s79 = sphi 0, %s77
      %s80 = sphi 0, %s79
      %s94 = sphi 0, %s80
      %s98 = sphi 0, %s98
      %s100 = sphi 0, %s98
      %s101 = sphi 0, %s100
      %s115 = sphi 0, %s101
      %s119 = sphi 0, %s119
      %s121 = sphi 0, %s119
      %s122 = sphi 0, %s121
      %s136 = sphi 0, %s122
      %s140 = sphi 0, %s140
      %s142 = sphi 0, %s140
      %s143 = sphi 0, %s142
      %s157 = sphi 0, %s143
      %s161 = sphi 0, %s161
      %s163 = sphi 0, %s161
      %s164 = sphi 0, %s163
      %s178 = sphi 0, %s164
      %s182 = sphi 0, %s182
      %s184 = sphi 0, %s182
      %s185 = sphi 0, %s184
      %s199 = sphi 0, %s185
      %s205 = sphi 0, %s207
      %s208 = sphi 0, %s205
      %s209 = sphi 0, %s208
      %s225 = sphi 0, %s209
    $region4: #{tpu_custom_call.1} parent=1 // loop_header_branch
      %20 = sbr.rel (%p18) target = $region8
    $region5: #{tpu_custom_call.1} parent=1 // loop_body
      %s22 = ssub.s32 %s17, 1
      %s23 = ssub.s32 %s17, 2
      %s24 = sadd.s32 %s17, 1
      %s25 = ssub.s32 %s17, %s24
      %p26 = scmp.eq.s32.totalorder %s25, 0
      %s28 = sadd.s32 %s27, 1
      %s29 = scalar_select %p26, %s27, %s28
      %p32 = pneg %p26
      %p33 = scmp.eq.s32.totalorder %s17, 1
      %p34 = por %p32, %p33
      %p35 = scmp.ne.s32.totalorder %s27, %s30
      %p36 = scmp.eq.s32.totalorder %s17, 0
      %p37 = por %p35, %p36
      %p38 = scmp.ne.s32.totalorder %s27, %s30
      %p39 = scmp.eq.s32.totalorder %s22, 1
      %p40 = por %p38, %p39
      %p41 = scmp.ne.s32.totalorder %s30, %s31
      %p42 = scmp.eq.s32.totalorder %s22, 0
      %p43 = por %p41, %p42
      %p44 = scmp.ne.s32.totalorder %s30, %s31
      %p45 = scmp.eq.s32.totalorder %s23, 1
      %p46 = por %p44, %p45
      %p48 = scmp.ne.s32.totalorder %s31, %s47
      %p49 = scmp.eq.s32.totalorder %s23, 0
      %p50 = por %p48, %p49
      %s51 = ssub.s32 %s17, %s24
      %p52 = scmp.eq.s32.totalorder %s51, 0
      %s54 = sadd.s32 %s53, 1
      %s55 = scalar_select %p52, %s53, %s54
      %p58 = pneg %p52
      %p59 = scmp.eq.s32.totalorder %s17, 1
      %p60 = por %p58, %p59
      %p61 = scmp.ne.s32.totalorder %s53, %s56
      %p62 = scmp.eq.s32.totalorder %s17, 0
      %p63 = por %p61, %p62
      %p64 = scmp.ne.s32.totalorder %s53, %s56
      %p65 = scmp.eq.s32.totalorder %s22, 1
      %p66 = por %p64, %p65
      %p67 = scmp.ne.s32.totalorder %s56, %s57
      %p68 = scmp.eq.s32.totalorder %s22, 0
      %p69 = por %p67, %p68
      %p70 = scmp.ne.s32.totalorder %s56, %s57
      %p71 = scmp.eq.s32.totalorder %s23, 1
      %p72 = por %p70, %p71
      %p74 = scmp.ne.s32.totalorder %s57, %s73
      %p75 = scmp.eq.s32.totalorder %s23, 0
      %p76 = por %p74, %p75
      %s78 = sadd.s32 %s77, 1
      %p81 = scmp.eq.s32.totalorder %s17, 1
      %p82 = scmp.ne.s32.totalorder %s77, %s79
      %p83 = scmp.eq.s32.totalorder %s17, 0
      %p84 = por %p82, %p83
      %p85 = scmp.ne.s32.totalorder %s77, %s79
      %p86 = scmp.eq.s32.totalorder %s22, 1
      %p87 = por %p85, %p86
      %p88 = scmp.ne.s32.totalorder %s79, %s80
      %p89 = scmp.eq.s32.totalorder %s22, 0
      %p90 = por %p88, %p89
      %p91 = scmp.ne.s32.totalorder %s79, %s80
      %p92 = scmp.eq.s32.totalorder %s23, 1
      %p93 = por %p91, %p92
      %p95 = scmp.ne.s32.totalorder %s80, %s94
      %p96 = scmp.eq.s32.totalorder %s23, 0
      %p97 = por %p95, %p96
      %s99 = sadd.s32 %s98, 1
      %p102 = scmp.eq.s32.totalorder %s17, 1
      %p103 = scmp.ne.s32.totalorder %s98, %s100
      %p104 = scmp.eq.s32.totalorder %s17, 0
      %p105 = por %p103, %p104
      %p106 = scmp.ne.s32.totalorder %s98, %s100
      %p107 = scmp.eq.s32.totalorder %s22, 1
      %p108 = por %p106, %p107
      %p109 = scmp.ne.s32.totalorder %s100, %s101
      %p110 = scmp.eq.s32.totalorder %s22, 0
      %p111 = por %p109, %p110
      %p112 = scmp.ne.s32.totalorder %s100, %s101
      %p113 = scmp.eq.s32.totalorder %s23, 1
      %p114 = por %p112, %p113
      %p116 = scmp.ne.s32.totalorder %s101, %s115
      %p117 = scmp.eq.s32.totalorder %s23, 0
      %p118 = por %p116, %p117
      %s120 = sadd.s32 %s119, 1
      %p123 = scmp.eq.s32.totalorder %s17, 1
      %p124 = scmp.ne.s32.totalorder %s119, %s121
      %p125 = scmp.eq.s32.totalorder %s17, 0
      %p126 = por %p124, %p125
      %p127 = scmp.ne.s32.totalorder %s119, %s121
      %p128 = scmp.eq.s32.totalorder %s22, 1
      %p129 = por %p127, %p128
      %p130 = scmp.ne.s32.totalorder %s121, %s122
      %p131 = scmp.eq.s32.totalorder %s22, 0
      %p132 = por %p130, %p131
      %p133 = scmp.ne.s32.totalorder %s121, %s122
      %p134 = scmp.eq.s32.totalorder %s23, 1
      %p135 = por %p133, %p134
      %p137 = scmp.ne.s32.totalorder %s122, %s136
      %p138 = scmp.eq.s32.totalorder %s23, 0
      %p139 = por %p137, %p138
      %s141 = sadd.s32 %s140, 1
      %p144 = scmp.eq.s32.totalorder %s17, 1
      %p145 = scmp.ne.s32.totalorder %s140, %s142
      %p146 = scmp.eq.s32.totalorder %s17, 0
      %p147 = por %p145, %p146
      %p148 = scmp.ne.s32.totalorder %s140, %s142
      %p149 = scmp.eq.s32.totalorder %s22, 1
      %p150 = por %p148, %p149
      %p151 = scmp.ne.s32.totalorder %s142, %s143
      %p152 = scmp.eq.s32.totalorder %s22, 0
      %p153 = por %p151, %p152
      %p154 = scmp.ne.s32.totalorder %s142, %s143
      %p155 = scmp.eq.s32.totalorder %s23, 1
      %p156 = por %p154, %p155
      %p158 = scmp.ne.s32.totalorder %s143, %s157
      %p159 = scmp.eq.s32.totalorder %s23, 0
      %p160 = por %p158, %p159
      %s162 = sadd.s32 %s161, 1
      %p165 = scmp.eq.s32.totalorder %s17, 1
      %p166 = scmp.ne.s32.totalorder %s161, %s163
      %p167 = scmp.eq.s32.totalorder %s17, 0
      %p168 = por %p166, %p167
      %p169 = scmp.ne.s32.totalorder %s161, %s163
      %p170 = scmp.eq.s32.totalorder %s22, 1
      %p171 = por %p169, %p170
      %p172 = scmp.ne.s32.totalorder %s163, %s164
      %p173 = scmp.eq.s32.totalorder %s22, 0
      %p174 = por %p172, %p173
      %p175 = scmp.ne.s32.totalorder %s163, %s164
      %p176 = scmp.eq.s32.totalorder %s23, 1
      %p177 = por %p175, %p176
      %p179 = scmp.ne.s32.totalorder %s164, %s178
      %p180 = scmp.eq.s32.totalorder %s23, 0
      %p181 = por %p179, %p180
      %s183 = sadd.s32 %s182, 1
      %p186 = scmp.eq.s32.totalorder %s17, 1
      %p187 = scmp.ne.s32.totalorder %s182, %s184
      %p188 = scmp.eq.s32.totalorder %s17, 0
      %p189 = por %p187, %p188
      %p190 = scmp.ne.s32.totalorder %s182, %s184
      %p191 = scmp.eq.s32.totalorder %s22, 1
      %p192 = por %p190, %p191
      %p193 = scmp.ne.s32.totalorder %s184, %s185
      %p194 = scmp.eq.s32.totalorder %s22, 0
      %p195 = por %p193, %p194
      %p196 = scmp.ne.s32.totalorder %s184, %s185
      %p197 = scmp.eq.s32.totalorder %s23, 1
      %p198 = por %p196, %p197
      %p200 = scmp.ne.s32.totalorder %s185, %s199
      %p201 = scmp.eq.s32.totalorder %s23, 0
      %p202 = por %p200, %p201
      %s203 = ssub.s32 %s17, %s24
      %p204 = scmp.eq.s32.totalorder %s203, 0
      %s206 = sadd.s32 %s205, 1
      %s207 = scalar_select %p204, %s205, %s206
      %p210 = pneg %p204
      %p211 = scmp.eq.s32.totalorder %s17, 1
      %p212 = por %p210, %p211
      %p213 = scmp.ne.s32.totalorder %s205, %s208
      %p214 = scmp.eq.s32.totalorder %s17, 0
      %p215 = por %p213, %p214
      %p216 = scmp.ne.s32.totalorder %s205, %s208
      %p217 = scmp.eq.s32.totalorder %s22, 1
      %p218 = por %p216, %p217
      %p219 = scmp.ne.s32.totalorder %s208, %s209
      %p220 = scmp.eq.s32.totalorder %s22, 0
      %p221 = por %p219, %p220
      %p222 = scmp.ne.s32.totalorder %s208, %s209
      %p223 = scmp.eq.s32.totalorder %s23, 1
      %p224 = por %p222, %p223
      %p226 = scmp.ne.s32.totalorder %s209, %s225
      %p227 = scmp.eq.s32.totalorder %s23, 0
      %p228 = por %p226, %p227
      %p229 = scmp.le.s32.totalorder 1, %s17
      %p230 = scmp.lt.s32.totalorder %s17, 3
      %p231 = pnand %p229, %p230
      %p232 = pneg %p231
      // Predicated region
      $region9: #{tpu_custom_call.1} parent=5 // pred_check
        _
      $region10: #{tpu_custom_call.1} parent=5 // pred_check_branch
        %234 = sbr.rel (%p231) target = $region12
      $region11: #{tpu_custom_call.1} parent=5 // pred_region
        %s235 = ssub.s32 %s17, 1
        // Predicated region
        $region13: #{tpu_custom_call.1} parent=11 // pred_check
          %p236 = pneg %p90
        $region14: #{tpu_custom_call.1} parent=11 // pred_check_branch
          %238 = sbr.rel (%p236) target = $region16
        $region15: #{tpu_custom_call.1} parent=11 // pred_region
          _
        $region16: #{tpu_custom_call.1} parent=11 // pred_fallthru
          _
        // Predicated region
        $region17: #{tpu_custom_call.1} parent=11 // pred_check
          %p239 = pneg %p111
        $region18: #{tpu_custom_call.1} parent=11 // pred_check_branch
          %241 = sbr.rel (%p239) target = $region20
        $region19: #{tpu_custom_call.1} parent=11 // pred_region
          _
        $region20: #{tpu_custom_call.1} parent=11 // pred_fallthru
          _
        // Predicated region
        $region21: #{tpu_custom_call.1} parent=11 // pred_check
          %p242 = pneg %p132
        $region22: #{tpu_custom_call.1} parent=11 // pred_check_branch
          %244 = sbr.rel (%p242) target = $region24
        $region23: #{tpu_custom_call.1} parent=11 // pred_region
          _
        $region24: #{tpu_custom_call.1} parent=11 // pred_fallthru
          _
        // Predicated region
        $region25: #{tpu_custom_call.1} parent=11 // pred_check
          %p245 = pneg %p153
        $region26: #{tpu_custom_call.1} parent=11 // pred_check_branch
          %247 = sbr.rel (%p245) target = $region28
        $region27: #{tpu_custom_call.1} parent=11 // pred_region
          _
        $region28: #{tpu_custom_call.1} parent=11 // pred_fallthru
          _
        // Predicated region
        $region29: #{tpu_custom_call.1} parent=11 // pred_check
          %p248 = pneg %p174
        $region30: #{tpu_custom_call.1} parent=11 // pred_check_branch
          %250 = sbr.rel (%p248) target = $region32
        $region31: #{tpu_custom_call.1} parent=11 // pred_region
          _
        $region32: #{tpu_custom_call.1} parent=11 // pred_fallthru
          _
        // Predicated region
        $region33: #{tpu_custom_call.1} parent=11 // pred_check
          %p251 = pneg %p195
        $region34: #{tpu_custom_call.1} parent=11 // pred_check_branch
          %253 = sbr.rel (%p251) target = $region36
        $region35: #{tpu_custom_call.1} parent=11 // pred_region
          _
        $region36: #{tpu_custom_call.1} parent=11 // pred_fallthru
          _
      $region12: #{tpu_custom_call.1} parent=5 // pred_fallthru
        _
      %p254 = scmp.lt.s32.totalorder %s17, 2
      // Predicated region
      $region37: #{tpu_custom_call.1} parent=5 // pred_check
        %p255 = pneg %p254
      $region38: #{tpu_custom_call.1} parent=5 // pred_check_branch
        %257 = sbr.rel (%p255) target = $region40
      $region39: #{tpu_custom_call.1} parent=5 // pred_region
        // Predicated region
        $region41: #{tpu_custom_call.1} parent=39 // pred_check
          %p258 = pneg %p37
        $region42: #{tpu_custom_call.1} parent=39 // pred_check_branch
          %260 = sbr.rel (%p258) target = $region44
        $region43: #{tpu_custom_call.1} parent=39 // pred_region
          %s261 = smul.u32 32, %s17
          %p262 = scmp.lt.s32.totalorder %s261, 63
          %s263 = scalar_select %p262, %s261, 63
          %s264 = smul.addr %s263, 8
          %s265 = scalar_lea.vmem %s0, %s264
          %s266 = smul.u32 32, %s17
        $region44: #{tpu_custom_call.1} parent=39 // pred_fallthru
          _
        // Predicated region
        $region45: #{tpu_custom_call.1} parent=39 // pred_check
          %p267 = pneg %p63
        $region46: #{tpu_custom_call.1} parent=39 // pred_check_branch
          %269 = sbr.rel (%p267) target = $region48
        $region47: #{tpu_custom_call.1} parent=39 // pred_region
          %s270 = smul.u32 32, %s17
          %p271 = scmp.lt.s32.totalorder %s270, 63
          %s272 = scalar_select %p271, %s270, 63
          %s273 = smul.addr %s272, 8
          %s274 = scalar_lea.vmem %s1, %s273
          %s275 = smul.u32 32, %s17
        $region48: #{tpu_custom_call.1} parent=39 // pred_fallthru
          _
      $region40: #{tpu_custom_call.1} parent=5 // pred_fallthru
        _
      %p276 = scmp.le.s32.totalorder 1, %s17
      %p277 = scmp.lt.s32.totalorder %s17, 3
      %p278 = pnand %p276, %p277
      %p279 = pneg %p278
      // Predicated region
      $region49: #{tpu_custom_call.1} parent=5 // pred_check
        _
      $region50: #{tpu_custom_call.1} parent=5 // pred_check_branch
        %281 = sbr.rel (%p278) target = $region52
      $region51: #{tpu_custom_call.1} parent=5 // pred_region
        %s282 = ssub.s32 %s17, 1
        %s283 = smul.u32 32, %s22
        %p284 = scmp.lt.s32.totalorder %s283, 63
        %s285 = scalar_select %p284, %s283, 63
        %s286 = smul.addr %s285, 8
        %s287 = scalar_lea.vmem %s0, %s286
        %p288 = pneg %p43
        %p289 = pneg %p40
        %s290 = smul.u32 32, %s22
        %p291 = scmp.lt.s32.totalorder %s290, 63
        %s292 = scalar_select %p291, %s290, 63
        %s293 = smul.addr %s292, 8
        %s294 = scalar_lea.vmem %s1, %s293
        %p295 = pneg %p69
        %p296 = pneg %p66
        %p297 = pneg %p90
        %p298 = pneg %p87
        %p299 = pneg %p111
        %p300 = pneg %p108
        %p301 = pneg %p132
        %p302 = pneg %p129
        %p303 = pneg %p153
        %p304 = pneg %p150
        %p305 = pneg %p174
        %p306 = pneg %p171
        %p307 = pneg %p195
        %p308 = pneg %p192
        %p309 = pneg %p221
        %p310 = pneg %p218
        %s311 = sand.u32 %s208, 1
        %s312 = scalar_lea.sflag [#allocation3], %s311
        %s313 = sand.u32 %s208, 1
        %s314 = smul.addr %s313, 256
        %s315 = scalar_lea.vmem [#allocation2], %s314
        %s316 = smul.u32 32, %s22
        %p317 = scmp.lt.s32.totalorder %s316, 63
        %s318 = scalar_select %p317, %s316, 63
        %s319 = smul.addr %s318, 8
        %s320 = scalar_lea.vmem %s0, %s319
        %s321 = smul.u32 32, %s22
        %s322 = smul.u32 32, %s22
        %p323 = scmp.lt.s32.totalorder %s322, 63
        %s324 = scalar_select %p323, %s322, 63
        %s325 = smul.addr %s324, 8
        %s326 = scalar_lea.vmem %s1, %s325
        %s327 = smul.u32 32, %s22
        %s328 = smul.u32 32, %s22
        %v329 = vld [vmem:[%s320] sm:$0xff]
        %v330 = vld [vmem:[%s320 + $0x8] sm:$0xff]
        %v331 = vld [vmem:[%s320 + $0x10] sm:$0xff]
        %v332 = vld [vmem:[%s320 + $0x18] sm:$0xff]
        %v333 = vld [vmem:[%s320 + $0x20] sm:$0xff]
        %v334 = vld [vmem:[%s320 + $0x28] sm:$0xff]
        %v335 = vld [vmem:[%s320 + $0x30] sm:$0xff]
        %v336 = vld [vmem:[%s320 + $0x38] sm:$0xff]
        %v337 = vld [vmem:[%s320 + $0x40] sm:$0xff]
        %v338 = vld [vmem:[%s320 + $0x48] sm:$0xff]
        %v339 = vld [vmem:[%s320 + $0x50] sm:$0xff]
        %v340 = vld [vmem:[%s320 + $0x58] sm:$0xff]
        %v341 = vld [vmem:[%s320 + $0x60] sm:$0xff]
        %v342 = vld [vmem:[%s320 + $0x68] sm:$0xff]
        %v343 = vld [vmem:[%s320 + $0x70] sm:$0xff]
        %v344 = vld [vmem:[%s320 + $0x78] sm:$0xff]
        %v345 = vld [vmem:[%s320 + $0x80] sm:$0xff]
        %v346 = vld [vmem:[%s320 + $0x88] sm:$0xff]
        %v347 = vld [vmem:[%s320 + $0x90] sm:$0xff]
        %v348 = vld [vmem:[%s320 + $0x98] sm:$0xff]
        %v349 = vld [vmem:[%s320 + $0xa0] sm:$0xff]
        %v350 = vld [vmem:[%s320 + $0xa8] sm:$0xff]
        %v351 = vld [vmem:[%s320 + $0xb0] sm:$0xff]
        %v352 = vld [vmem:[%s320 + $0xb8] sm:$0xff]
        %v353 = vld [vmem:[%s320 + $0xc0] sm:$0xff]
        %v354 = vld [vmem:[%s320 + $0xc8] sm:$0xff]
        %v355 = vld [vmem:[%s320 + $0xd0] sm:$0xff]
        %v356 = vld [vmem:[%s320 + $0xd8] sm:$0xff]
        %v357 = vld [vmem:[%s320 + $0xe0] sm:$0xff]
        %v358 = vld [vmem:[%s320 + $0xe8] sm:$0xff]
        %v359 = vld [vmem:[%s320 + $0xf0] sm:$0xff]
        %v360 = vld [vmem:[%s320 + $0xf8] sm:$0xff]
        %v361 = vld [vmem:[%s2] sm:$0xff]
        %v362 = vld [vmem:[%s2 + $0x8] sm:$0xff]
        %v363 = vld [vmem:[%s326] sm:$0xff]
        %v364 = vld [vmem:[%s326 + $0x8] sm:$0xff]
        %v365 = vld [vmem:[%s326 + $0x10] sm:$0xff]
        %v366 = vld [vmem:[%s326 + $0x18] sm:$0xff]
        %v367 = vld [vmem:[%s326 + $0x20] sm:$0xff]
        %v368 = vld [vmem:[%s326 + $0x28] sm:$0xff]
        %v369 = vld [vmem:[%s326 + $0x30] sm:$0xff]
        %v370 = vld [vmem:[%s326 + $0x38] sm:$0xff]
        %v371 = vld [vmem:[%s326 + $0x40] sm:$0xff]
        %v372 = vld [vmem:[%s326 + $0x48] sm:$0xff]
        %v373 = vld [vmem:[%s326 + $0x50] sm:$0xff]
        %v374 = vld [vmem:[%s326 + $0x58] sm:$0xff]
        %v375 = vld [vmem:[%s326 + $0x60] sm:$0xff]
        %v376 = vld [vmem:[%s326 + $0x68] sm:$0xff]
        %v377 = vld [vmem:[%s326 + $0x70] sm:$0xff]
        %v378 = vld [vmem:[%s326 + $0x78] sm:$0xff]
        %v379 = vld [vmem:[%s326 + $0x80] sm:$0xff]
        %v380 = vld [vmem:[%s326 + $0x88] sm:$0xff]
        %v381 = vld [vmem:[%s326 + $0x90] sm:$0xff]
        %v382 = vld [vmem:[%s326 + $0x98] sm:$0xff]
        %v383 = vld [vmem:[%s326 + $0xa0] sm:$0xff]
        %v384 = vld [vmem:[%s326 + $0xa8] sm:$0xff]
        %v385 = vld [vmem:[%s326 + $0xb0] sm:$0xff]
        %v386 = vld [vmem:[%s326 + $0xb8] sm:$0xff]
        %v387 = vld [vmem:[%s326 + $0xc0] sm:$0xff]
        %v388 = vld [vmem:[%s326 + $0xc8] sm:$0xff]
        %v389 = vld [vmem:[%s326 + $0xd0] sm:$0xff]
        %v390 = vld [vmem:[%s326 + $0xd8] sm:$0xff]
        %v391 = vld [vmem:[%s326 + $0xe0] sm:$0xff]
        %v392 = vld [vmem:[%s326 + $0xe8] sm:$0xff]
        %v393 = vld [vmem:[%s326 + $0xf0] sm:$0xff]
        %v394 = vld [vmem:[%s326 + $0xf8] sm:$0xff]
        %v395 = vld [vmem:[%s3] sm:$0xff]
        %v396 = vld [vmem:[%s3 + $0x8] sm:$0xff]
        %v397 = vld [vmem:[%s3 + $0x10] sm:$0xff]
        %v398 = vld [vmem:[%s3 + $0x18] sm:$0xff]
        %v399 = vld [vmem:[%s3 + $0x20] sm:$0xff]
        %v400 = vld [vmem:[%s3 + $0x28] sm:$0xff]
        %v401 = vld [vmem:[%s3 + $0x30] sm:$0xff]
        %v402 = vld [vmem:[%s3 + $0x38] sm:$0xff]
        %v403 = vld [vmem:[%s3 + $0x40] sm:$0xff]
        %v404 = vld [vmem:[%s3 + $0x48] sm:$0xff]
        %v405 = vld [vmem:[%s3 + $0x50] sm:$0xff]
        %v406 = vld [vmem:[%s3 + $0x58] sm:$0xff]
        %v407 = vld [vmem:[%s3 + $0x60] sm:$0xff]
        %v408 = vld [vmem:[%s3 + $0x68] sm:$0xff]
        %v409 = vld [vmem:[%s3 + $0x70] sm:$0xff]
        %v410 = vld [vmem:[%s3 + $0x78] sm:$0xff]
        %vm411 = vcmask 523264
        %v413 = vsel %vm411, %v363, 0
        %v416 = vsel %vm411, %v364, 0
        %v419 = vsel %vm411, %v365, 0
        %v422 = vsel %vm411, %v366, 0
        %v425 = vsel %vm411, %v367, 0
        %v428 = vsel %vm411, %v368, 0
        %v431 = vsel %vm411, %v369, 0
        %v434 = vsel %vm411, %v370, 0
        %v437 = vsel %vm411, %v371, 0
        %v440 = vsel %vm411, %v372, 0
        %v443 = vsel %vm411, %v373, 0
        %v446 = vsel %vm411, %v374, 0
        %v449 = vsel %vm411, %v375, 0
        %v452 = vsel %vm411, %v376, 0
        %v455 = vsel %vm411, %v377, 0
        %v458 = vsel %vm411, %v378, 0
        %v461 = vsel %vm411, %v379, 0
        %v464 = vsel %vm411, %v380, 0
        %v467 = vsel %vm411, %v381, 0
        %v470 = vsel %vm411, %v382, 0
        %v473 = vsel %vm411, %v383, 0
        %v476 = vsel %vm411, %v384, 0
        %v479 = vsel %vm411, %v385, 0
        %v482 = vsel %vm411, %v386, 0
        %v485 = vsel %vm411, %v387, 0
        %v488 = vsel %vm411, %v388, 0
        %v491 = vsel %vm411, %v389, 0
        %v494 = vsel %vm411, %v390, 0
        %v497 = vsel %vm411, %v391, 0
        %v500 = vsel %vm411, %v392, 0
        %v503 = vsel %vm411, %v393, 0
        %v506 = vsel %vm411, %v394, 0
        %508 = vmatprep.subr.mxu0 0.0
        %509 = vmatpush1.msra.mxu0 0.0
        %510 = vmatprep.subr.mxu0 0.0
        %511 = vmatpush1.msra.mxu0 0.0
        %512 = vmatprep.subr.mxu0 0.0
        %513 = vmatpush1.msra.mxu0 0.0
        %514 = vmatprep.subr.mxu0 0.0
        %515 = vmatpush1.msra.mxu0 0.0
        %516 = vmatprep.subr.mxu0 0.0
        %517 = vmatpush1.msra.mxu0 0.0
        %518 = vmatprep.subr.mxu0 0.0
        %519 = vmatpush1.msra.mxu0 0.0
        %520 = vmatprep.subr.mxu0 0.0
        %521 = vmatpush1.msra.mxu0 0.0
        %522 = vmatprep.subr.mxu0 0.0
        %523 = vmatpush1.msra.mxu0 0.0
        %524 = vmatprep.subr.mxu0 %v410
        %525 = vmatpush1.msra.mxu0 %v409
        %526 = vmatprep.subr.mxu0 %v408
        %527 = vmatpush1.msra.mxu0 %v407
        %528 = vmatprep.subr.mxu0 %v406
        %529 = vmatpush1.msra.mxu0 %v405
        %530 = vmatprep.subr.mxu0 %v404
        %531 = vmatpush1.msra.mxu0 %v403
        %532 = vmatprep.subr.mxu0 %v402
        %533 = vmatpush1.msra.mxu0 %v401
        %534 = vmatprep.subr.mxu0 %v400
        %535 = vmatpush1.msra.mxu0 %v399
        %536 = vmatprep.subr.mxu0 %v398
        %537 = vmatpush1.msra.mxu0 %v397
        %538 = vmatprep.subr.mxu0 %v396
        %539 = vmatpush1.msra.mxu0 %v395
        %540 = vmatprep.subr.mxu0 0.0
        %541 = vmatpush2.msra.mxu0 0.0
        %542 = vmatprep.subr.mxu0 0.0
        %543 = vmatpush2.msra.mxu0 0.0
        %544 = vmatprep.subr.mxu0 0.0
        %545 = vmatpush2.msra.mxu0 0.0
        %546 = vmatprep.subr.mxu0 0.0
        %547 = vmatpush2.msra.mxu0 0.0
        %548 = vmatprep.subr.mxu0 0.0
        %549 = vmatpush2.msra.mxu0 0.0
        %550 = vmatprep.subr.mxu0 0.0
        %551 = vmatpush2.msra.mxu0 0.0
        %552 = vmatprep.subr.mxu0 0.0
        %553 = vmatpush2.msra.mxu0 0.0
        %554 = vmatprep.subr.mxu0 0.0
        %555 = vmatpush2.msra.mxu0 0.0
        %556 = vmatprep.subr.mxu0 0.0
        %557 = vmatpush2.msra.mxu0 0.0
        %558 = vmatprep.subr.mxu0 0.0
        %559 = vmatpush2.msra.mxu0 0.0
        %560 = vmatprep.subr.mxu0 0.0
        %561 = vmatpush2.msra.mxu0 0.0
        %562 = vmatprep.subr.mxu0 0.0
        %563 = vmatpush2.msra.mxu0 0.0
        %564 = vmatprep.subr.mxu0 0.0
        %565 = vmatpush2.msra.mxu0 0.0
        %566 = vmatprep.subr.mxu0 0.0
        %567 = vmatpush2.msra.mxu0 0.0
        %568 = vmatprep.subr.mxu0 0.0
        %569 = vmatpush2.msra.mxu0 0.0
        %570 = vmatprep.subr.mxu0 0.0
        %571 = vmatpush2.msra.mxu0 0.0
        %572 = vmatprep.mubr.f32.mxu0 0.0
        %573 = vmatmul.mubr.f32.gmra.mxu0 %v413
        %v574 = vpop.f32.mrf.mxu0
        %v575 = vadd.f32 0.0, %v574
        %v576 = vpop.f32.mrf.mxu0
        %v577 = vadd.f32 0.0, %v576
        %578 = vmatprep.mubr.f32.mxu0 0.0
        %579 = vmatmul.mubr.f32.gmra.mxu0 %v416
        %v580 = vpop.f32.mrf.mxu0
        %v581 = vadd.f32 0.0, %v580
        %v582 = vpop.f32.mrf.mxu0
        %v583 = vadd.f32 0.0, %v582
        %584 = vmatprep.mubr.f32.mxu0 0.0
        %585 = vmatmul.mubr.f32.gmra.mxu0 %v419
        %v586 = vpop.f32.mrf.mxu0
        %v587 = vadd.f32 0.0, %v586
        %v588 = vpop.f32.mrf.mxu0
        %v589 = vadd.f32 0.0, %v588
        %590 = vmatprep.mubr.f32.mxu0 0.0
        %591 = vmatmul.mubr.f32.gmra.mxu0 %v422
        %v592 = vpop.f32.mrf.mxu0
        %v593 = vadd.f32 0.0, %v592
        %v594 = vpop.f32.mrf.mxu0
        %v595 = vadd.f32 0.0, %v594
        %596 = vmatprep.mubr.f32.mxu0 0.0
        %597 = vmatmul.mubr.f32.gmra.mxu0 %v425
        %v598 = vpop.f32.mrf.mxu0
        %v599 = vadd.f32 0.0, %v598
        %v600 = vpop.f32.mrf.mxu0
        %v601 = vadd.f32 0.0, %v600
        %602 = vmatprep.mubr.f32.mxu0 0.0
        %603 = vmatmul.mubr.f32.gmra.mxu0 %v428
        %v604 = vpop.f32.mrf.mxu0
        %v605 = vadd.f32 0.0, %v604
        %v606 = vpop.f32.mrf.mxu0
        %v607 = vadd.f32 0.0, %v606
        %608 = vmatprep.mubr.f32.mxu0 0.0
        %609 = vmatmul.mubr.f32.gmra.mxu0 %v431
        %v610 = vpop.f32.mrf.mxu0
        %v611 = vadd.f32 0.0, %v610
        %v612 = vpop.f32.mrf.mxu0
        %v613 = vadd.f32 0.0, %v612
        %614 = vmatprep.mubr.f32.mxu0 0.0
        %615 = vmatmul.mubr.f32.gmra.mxu0 %v434
        %v616 = vpop.f32.mrf.mxu0
        %v617 = vadd.f32 0.0, %v616
        %v618 = vpop.f32.mrf.mxu0
        %v619 = vadd.f32 0.0, %v618
        %620 = vmatprep.mubr.f32.mxu0 0.0
        %621 = vmatmul.mubr.f32.gmra.mxu0 %v437
        %v622 = vpop.f32.mrf.mxu0
        %v623 = vadd.f32 0.0, %v622
        %v624 = vpop.f32.mrf.mxu0
        %v625 = vadd.f32 0.0, %v624
        %626 = vmatprep.mubr.f32.mxu0 0.0
        %627 = vmatmul.mubr.f32.gmra.mxu0 %v440
        %v628 = vpop.f32.mrf.mxu0
        %v629 = vadd.f32 0.0, %v628
        %v630 = vpop.f32.mrf.mxu0
        %v631 = vadd.f32 0.0, %v630
        %632 = vmatprep.mubr.f32.mxu0 0.0
        %633 = vmatmul.mubr.f32.gmra.mxu0 %v443
        %v634 = vpop.f32.mrf.mxu0
        %v635 = vadd.f32 0.0, %v634
        %v636 = vpop.f32.mrf.mxu0
        %v637 = vadd.f32 0.0, %v636
        %638 = vmatprep.mubr.f32.mxu0 0.0
        %639 = vmatmul.mubr.f32.gmra.mxu0 %v446
        %v640 = vpop.f32.mrf.mxu0
        %v641 = vadd.f32 0.0, %v640
        %v642 = vpop.f32.mrf.mxu0
        %v643 = vadd.f32 0.0, %v642
        %644 = vmatprep.mubr.f32.mxu0 0.0
        %645 = vmatmul.mubr.f32.gmra.mxu0 %v449
        %v646 = vpop.f32.mrf.mxu0
        %v647 = vadd.f32 0.0, %v646
        %v648 = vpop.f32.mrf.mxu0
        %v649 = vadd.f32 0.0, %v648
        %650 = vmatprep.mubr.f32.mxu0 0.0
        %651 = vmatmul.mubr.f32.gmra.mxu0 %v452
        %v652 = vpop.f32.mrf.mxu0
        %v653 = vadd.f32 0.0, %v652
        %v654 = vpop.f32.mrf.mxu0
        %v655 = vadd.f32 0.0, %v654
        %656 = vmatprep.mubr.f32.mxu0 0.0
        %657 = vmatmul.mubr.f32.gmra.mxu0 %v455
        %v658 = vpop.f32.mrf.mxu0
        %v659 = vadd.f32 0.0, %v658
        %v660 = vpop.f32.mrf.mxu0
        %v661 = vadd.f32 0.0, %v660
        %662 = vmatprep.mubr.f32.mxu0 0.0
        %663 = vmatmul.mubr.f32.gmra.mxu0 %v458
        %v664 = vpop.f32.mrf.mxu0
        %v665 = vadd.f32 0.0, %v664
        %v666 = vpop.f32.mrf.mxu0
        %v667 = vadd.f32 0.0, %v666
        %668 = vmatprep.mubr.f32.mxu0 0.0
        %669 = vmatmul.mubr.f32.gmra.mxu0 %v461
        %v670 = vpop.f32.mrf.mxu0
        %v671 = vadd.f32 0.0, %v670
        %v672 = vpop.f32.mrf.mxu0
        %v673 = vadd.f32 0.0, %v672
        %674 = vmatprep.mubr.f32.mxu0 0.0
        %675 = vmatmul.mubr.f32.gmra.mxu0 %v464
        %v676 = vpop.f32.mrf.mxu0
        %v677 = vadd.f32 0.0, %v676
        %v678 = vpop.f32.mrf.mxu0
        %v679 = vadd.f32 0.0, %v678
        %680 = vmatprep.mubr.f32.mxu0 0.0
        %681 = vmatmul.mubr.f32.gmra.mxu0 %v467
        %v682 = vpop.f32.mrf.mxu0
        %v683 = vadd.f32 0.0, %v682
        %v684 = vpop.f32.mrf.mxu0
        %v685 = vadd.f32 0.0, %v684
        %686 = vmatprep.mubr.f32.mxu0 0.0
        %687 = vmatmul.mubr.f32.gmra.mxu0 %v470
        %v688 = vpop.f32.mrf.mxu0
        %v689 = vadd.f32 0.0, %v688
        %v690 = vpop.f32.mrf.mxu0
        %v691 = vadd.f32 0.0, %v690
        %692 = vmatprep.mubr.f32.mxu0 0.0
        %693 = vmatmul.mubr.f32.gmra.mxu0 %v473
        %v694 = vpop.f32.mrf.mxu0
        %v695 = vadd.f32 0.0, %v694
        %v696 = vpop.f32.mrf.mxu0
        %v697 = vadd.f32 0.0, %v696
        %698 = vmatprep.mubr.f32.mxu0 0.0
        %699 = vmatmul.mubr.f32.gmra.mxu0 %v476
        %v700 = vpop.f32.mrf.mxu0
        %v701 = vadd.f32 0.0, %v700
        %v702 = vpop.f32.mrf.mxu0
        %v703 = vadd.f32 0.0, %v702
        %704 = vmatprep.mubr.f32.mxu0 0.0
        %705 = vmatmul.mubr.f32.gmra.mxu0 %v479
        %v706 = vpop.f32.mrf.mxu0
        %v707 = vadd.f32 0.0, %v706
        %v708 = vpop.f32.mrf.mxu0
        %v709 = vadd.f32 0.0, %v708
        %710 = vmatprep.mubr.f32.mxu0 0.0
        %711 = vmatmul.mubr.f32.gmra.mxu0 %v482
        %v712 = vpop.f32.mrf.mxu0
        %v713 = vadd.f32 0.0, %v712
        %v714 = vpop.f32.mrf.mxu0
        %v715 = vadd.f32 0.0, %v714
        %716 = vmatprep.mubr.f32.mxu0 0.0
        %717 = vmatmul.mubr.f32.gmra.mxu0 %v485
        %v718 = vpop.f32.mrf.mxu0
        %v719 = vadd.f32 0.0, %v718
        %v720 = vpop.f32.mrf.mxu0
        %v721 = vadd.f32 0.0, %v720
        %722 = vmatprep.mubr.f32.mxu0 0.0
        %723 = vmatmul.mubr.f32.gmra.mxu0 %v488
        %v724 = vpop.f32.mrf.mxu0
        %v725 = vadd.f32 0.0, %v724
        %v726 = vpop.f32.mrf.mxu0
        %v727 = vadd.f32 0.0, %v726
        %728 = vmatprep.mubr.f32.mxu0 0.0
        %729 = vmatmul.mubr.f32.gmra.mxu0 %v491
        %v730 = vpop.f32.mrf.mxu0
        %v731 = vadd.f32 0.0, %v730
        %v732 = vpop.f32.mrf.mxu0
        %v733 = vadd.f32 0.0, %v732
        %734 = vmatprep.mubr.f32.mxu0 0.0
        %735 = vmatmul.mubr.f32.gmra.mxu0 %v494
        %v736 = vpop.f32.mrf.mxu0
        %v737 = vadd.f32 0.0, %v736
        %v738 = vpop.f32.mrf.mxu0
        %v739 = vadd.f32 0.0, %v738
        %740 = vmatprep.mubr.f32.mxu0 0.0
        %741 = vmatmul.mubr.f32.gmra.mxu0 %v497
        %v742 = vpop.f32.mrf.mxu0
        %v743 = vadd.f32 0.0, %v742
        %v744 = vpop.f32.mrf.mxu0
        %v745 = vadd.f32 0.0, %v744
        %746 = vmatprep.mubr.f32.mxu0 0.0
        %747 = vmatmul.mubr.f32.gmra.mxu0 %v500
        %v748 = vpop.f32.mrf.mxu0
        %v749 = vadd.f32 0.0, %v748
        %v750 = vpop.f32.mrf.mxu0
        %v751 = vadd.f32 0.0, %v750
        %752 = vmatprep.mubr.f32.mxu0 0.0
        %753 = vmatmul.mubr.f32.gmra.mxu0 %v503
        %v754 = vpop.f32.mrf.mxu0
        %v755 = vadd.f32 0.0, %v754
        %v756 = vpop.f32.mrf.mxu0
        %v757 = vadd.f32 0.0, %v756
        %758 = vmatprep.mubr.f32.mxu0 0.0
        %759 = vmatmul.mubr.f32.gmra.mxu0 %v506
        %v760 = vpop.f32.mrf.mxu0
        %v761 = vadd.f32 0.0, %v760
        %v762 = vpop.f32.mrf.mxu0
        %v763 = vadd.f32 0.0, %v762
        %764 = vdwg.mxu0
        %vm765 = vcmask 64512
        %v767 = vsel %vm765, %v329, 0
        %v770 = vsel %vm765, %v330, 0
        %v773 = vsel %vm765, %v331, 0
        %v776 = vsel %vm765, %v332, 0
        %v779 = vsel %vm765, %v333, 0
        %v782 = vsel %vm765, %v334, 0
        %v785 = vsel %vm765, %v335, 0
        %v788 = vsel %vm765, %v336, 0
        %v791 = vsel %vm765, %v337, 0
        %v794 = vsel %vm765, %v338, 0
        %v797 = vsel %vm765, %v339, 0
        %v800 = vsel %vm765, %v340, 0
        %v803 = vsel %vm765, %v341, 0
        %v806 = vsel %vm765, %v342, 0
        %v809 = vsel %vm765, %v343, 0
        %v812 = vsel %vm765, %v344, 0
        %v815 = vsel %vm765, %v345, 0
        %v818 = vsel %vm765, %v346, 0
        %v821 = vsel %vm765, %v347, 0
        %v824 = vsel %vm765, %v348, 0
        %v827 = vsel %vm765, %v349, 0
        %v830 = vsel %vm765, %v350, 0
        %v833 = vsel %vm765, %v351, 0
        %v836 = vsel %vm765, %v352, 0
        %v839 = vsel %vm765, %v353, 0
        %v842 = vsel %vm765, %v354, 0
        %v845 = vsel %vm765, %v355, 0
        %v848 = vsel %vm765, %v356, 0
        %v851 = vsel %vm765, %v357, 0
        %v854 = vsel %vm765, %v358, 0
        %v857 = vsel %vm765, %v359, 0
        %v860 = vsel %vm765, %v360, 0
        %862 = vmatprep.subr.mxu0 0.0
        %863 = vmatpush1.msra.mxu0 0.0
        %864 = vmatprep.subr.mxu0 0.0
        %865 = vmatpush1.msra.mxu0 0.0
        %866 = vmatprep.subr.mxu0 0.0
        %867 = vmatpush1.msra.mxu0 0.0
        %868 = vmatprep.subr.mxu0 0.0
        %869 = vmatpush1.msra.mxu0 0.0
        %870 = vmatprep.subr.mxu0 0.0
        %871 = vmatpush1.msra.mxu0 0.0
        %872 = vmatprep.subr.mxu0 0.0
        %873 = vmatpush1.msra.mxu0 0.0
        %874 = vmatprep.subr.mxu0 0.0
        %875 = vmatpush1.msra.mxu0 0.0
        %876 = vmatprep.subr.mxu0 0.0
        %877 = vmatpush1.msra.mxu0 0.0
        %878 = vmatprep.subr.mxu0 0.0
        %879 = vmatpush1.msra.mxu0 0.0
        %880 = vmatprep.subr.mxu0 0.0
        %881 = vmatpush1.msra.mxu0 0.0
        %882 = vmatprep.subr.mxu0 0.0
        %883 = vmatpush1.msra.mxu0 0.0
        %884 = vmatprep.subr.mxu0 0.0
        %885 = vmatpush1.msra.mxu0 0.0
        %886 = vmatprep.subr.mxu0 0.0
        %887 = vmatpush1.msra.mxu0 0.0
        %888 = vmatprep.subr.mxu0 0.0
        %889 = vmatpush1.msra.mxu0 0.0
        %890 = vmatprep.subr.mxu0 0.0
        %891 = vmatpush1.msra.mxu0 0.0
        %892 = vmatprep.subr.mxu0 %v362
        %893 = vmatpush1.msra.mxu0 %v361
        %894 = vmatprep.subr.mxu0 0.0
        %895 = vmatpush2.msra.mxu0 0.0
        %896 = vmatprep.subr.mxu0 0.0
        %897 = vmatpush2.msra.mxu0 0.0
        %898 = vmatprep.subr.mxu0 0.0
        %899 = vmatpush2.msra.mxu0 0.0
        %900 = vmatprep.subr.mxu0 0.0
        %901 = vmatpush2.msra.mxu0 0.0
        %902 = vmatprep.subr.mxu0 0.0
        %903 = vmatpush2.msra.mxu0 0.0
        %904 = vmatprep.subr.mxu0 0.0
        %905 = vmatpush2.msra.mxu0 0.0
        %906 = vmatprep.subr.mxu0 0.0
        %907 = vmatpush2.msra.mxu0 0.0
        %908 = vmatprep.subr.mxu0 0.0
        %909 = vmatpush2.msra.mxu0 0.0
        %910 = vmatprep.subr.mxu0 0.0
        %911 = vmatpush2.msra.mxu0 0.0
        %912 = vmatprep.subr.mxu0 0.0
        %913 = vmatpush2.msra.mxu0 0.0
        %914 = vmatprep.subr.mxu0 0.0
        %915 = vmatpush2.msra.mxu0 0.0
        %916 = vmatprep.subr.mxu0 0.0
        %917 = vmatpush2.msra.mxu0 0.0
        %918 = vmatprep.subr.mxu0 0.0
        %919 = vmatpush2.msra.mxu0 0.0
        %920 = vmatprep.subr.mxu0 0.0
        %921 = vmatpush2.msra.mxu0 0.0
        %922 = vmatprep.subr.mxu0 0.0
        %923 = vmatpush2.msra.mxu0 0.0
        %924 = vmatprep.subr.mxu0 0.0
        %925 = vmatpush2.msra.mxu0 0.0
        %926 = vmatprep.mubr.f32.mxu0 0.0
        %927 = vmatmul.mubr.f32.gmra.mxu0 %v767
        %v928 = vpop.f32.mrf.mxu0
        %v929 = vadd.f32 %v575, %v928
        %v930 = vpop.f32.mrf.mxu0
        %v931 = vadd.f32 %v577, %v930
        %932 = vmatprep.mubr.f32.mxu0 0.0
        %933 = vmatmul.mubr.f32.gmra.mxu0 %v770
        %v934 = vpop.f32.mrf.mxu0
        %v935 = vadd.f32 %v581, %v934
        %v936 = vpop.f32.mrf.mxu0
        %v937 = vadd.f32 %v583, %v936
        %938 = vmatprep.mubr.f32.mxu0 0.0
        %939 = vmatmul.mubr.f32.gmra.mxu0 %v773
        %v940 = vpop.f32.mrf.mxu0
        %v941 = vadd.f32 %v587, %v940
        %v942 = vpop.f32.mrf.mxu0
        %v943 = vadd.f32 %v589, %v942
        %944 = vmatprep.mubr.f32.mxu0 0.0
        %945 = vmatmul.mubr.f32.gmra.mxu0 %v776
        %v946 = vpop.f32.mrf.mxu0
        %v947 = vadd.f32 %v593, %v946
        %v948 = vpop.f32.mrf.mxu0
        %v949 = vadd.f32 %v595, %v948
        %950 = vmatprep.mubr.f32.mxu0 0.0
        %951 = vmatmul.mubr.f32.gmra.mxu0 %v779
        %v952 = vpop.f32.mrf.mxu0
        %v953 = vadd.f32 %v599, %v952
        %v954 = vpop.f32.mrf.mxu0
        %v955 = vadd.f32 %v601, %v954
        %956 = vmatprep.mubr.f32.mxu0 0.0
        %957 = vmatmul.mubr.f32.gmra.mxu0 %v782
        %v958 = vpop.f32.mrf.mxu0
        %v959 = vadd.f32 %v605, %v958
        %v960 = vpop.f32.mrf.mxu0
        %v961 = vadd.f32 %v607, %v960
        %962 = vmatprep.mubr.f32.mxu0 0.0
        %963 = vmatmul.mubr.f32.gmra.mxu0 %v785
        %v964 = vpop.f32.mrf.mxu0
        %v965 = vadd.f32 %v611, %v964
        %v966 = vpop.f32.mrf.mxu0
        %v967 = vadd.f32 %v613, %v966
        %968 = vmatprep.mubr.f32.mxu0 0.0
        %969 = vmatmul.mubr.f32.gmra.mxu0 %v788
        %v970 = vpop.f32.mrf.mxu0
        %v971 = vadd.f32 %v617, %v970
        %v972 = vpop.f32.mrf.mxu0
        %v973 = vadd.f32 %v619, %v972
        %974 = vmatprep.mubr.f32.mxu0 0.0
        %975 = vmatmul.mubr.f32.gmra.mxu0 %v791
        %v976 = vpop.f32.mrf.mxu0
        %v977 = vadd.f32 %v623, %v976
        %v978 = vpop.f32.mrf.mxu0
        %v979 = vadd.f32 %v625, %v978
        %980 = vmatprep.mubr.f32.mxu0 0.0
        %981 = vmatmul.mubr.f32.gmra.mxu0 %v794
        %v982 = vpop.f32.mrf.mxu0
        %v983 = vadd.f32 %v629, %v982
        %v984 = vpop.f32.mrf.mxu0
        %v985 = vadd.f32 %v631, %v984
        %986 = vmatprep.mubr.f32.mxu0 0.0
        %987 = vmatmul.mubr.f32.gmra.mxu0 %v797
        %v988 = vpop.f32.mrf.mxu0
        %v989 = vadd.f32 %v635, %v988
        %v990 = vpop.f32.mrf.mxu0
        %v991 = vadd.f32 %v637, %v990
        %992 = vmatprep.mubr.f32.mxu0 0.0
        %993 = vmatmul.mubr.f32.gmra.mxu0 %v800
        %v994 = vpop.f32.mrf.mxu0
        %v995 = vadd.f32 %v641, %v994
        %v996 = vpop.f32.mrf.mxu0
        %v997 = vadd.f32 %v643, %v996
        %998 = vmatprep.mubr.f32.mxu0 0.0
        %999 = vmatmul.mubr.f32.gmra.mxu0 %v803
        %v1000 = vpop.f32.mrf.mxu0
        %v1001 = vadd.f32 %v647, %v1000
        %v1002 = vpop.f32.mrf.mxu0
        %v1003 = vadd.f32 %v649, %v1002
        %1004 = vmatprep.mubr.f32.mxu0 0.0
        %1005 = vmatmul.mubr.f32.gmra.mxu0 %v806
        %v1006 = vpop.f32.mrf.mxu0
        %v1007 = vadd.f32 %v653, %v1006
        %v1008 = vpop.f32.mrf.mxu0
        %v1009 = vadd.f32 %v655, %v1008
        %1010 = vmatprep.mubr.f32.mxu0 0.0
        %1011 = vmatmul.mubr.f32.gmra.mxu0 %v809
        %v1012 = vpop.f32.mrf.mxu0
        %v1013 = vadd.f32 %v659, %v1012
        %v1014 = vpop.f32.mrf.mxu0
        %v1015 = vadd.f32 %v661, %v1014
        %1016 = vmatprep.mubr.f32.mxu0 0.0
        %1017 = vmatmul.mubr.f32.gmra.mxu0 %v812
        %v1018 = vpop.f32.mrf.mxu0
        %v1019 = vadd.f32 %v665, %v1018
        %v1020 = vpop.f32.mrf.mxu0
        %v1021 = vadd.f32 %v667, %v1020
        %1022 = vmatprep.mubr.f32.mxu0 0.0
        %1023 = vmatmul.mubr.f32.gmra.mxu0 %v815
        %v1024 = vpop.f32.mrf.mxu0
        %v1025 = vadd.f32 %v671, %v1024
        %v1026 = vpop.f32.mrf.mxu0
        %v1027 = vadd.f32 %v673, %v1026
        %1028 = vmatprep.mubr.f32.mxu0 0.0
        %1029 = vmatmul.mubr.f32.gmra.mxu0 %v818
        %v1030 = vpop.f32.mrf.mxu0
        %v1031 = vadd.f32 %v677, %v1030
        %v1032 = vpop.f32.mrf.mxu0
        %v1033 = vadd.f32 %v679, %v1032
        %1034 = vmatprep.mubr.f32.mxu0 0.0
        %1035 = vmatmul.mubr.f32.gmra.mxu0 %v821
        %v1036 = vpop.f32.mrf.mxu0
        %v1037 = vadd.f32 %v683, %v1036
        %v1038 = vpop.f32.mrf.mxu0
        %v1039 = vadd.f32 %v685, %v1038
        %1040 = vmatprep.mubr.f32.mxu0 0.0
        %1041 = vmatmul.mubr.f32.gmra.mxu0 %v824
        %v1042 = vpop.f32.mrf.mxu0
        %v1043 = vadd.f32 %v689, %v1042
        %v1044 = vpop.f32.mrf.mxu0
        %v1045 = vadd.f32 %v691, %v1044
        %1046 = vmatprep.mubr.f32.mxu0 0.0
        %1047 = vmatmul.mubr.f32.gmra.mxu0 %v827
        %v1048 = vpop.f32.mrf.mxu0
        %v1049 = vadd.f32 %v695, %v1048
        %v1050 = vpop.f32.mrf.mxu0
        %v1051 = vadd.f32 %v697, %v1050
        %1052 = vmatprep.mubr.f32.mxu0 0.0
        %1053 = vmatmul.mubr.f32.gmra.mxu0 %v830
        %v1054 = vpop.f32.mrf.mxu0
        %v1055 = vadd.f32 %v701, %v1054
        %v1056 = vpop.f32.mrf.mxu0
        %v1057 = vadd.f32 %v703, %v1056
        %1058 = vmatprep.mubr.f32.mxu0 0.0
        %1059 = vmatmul.mubr.f32.gmra.mxu0 %v833
        %v1060 = vpop.f32.mrf.mxu0
        %v1061 = vadd.f32 %v707, %v1060
        %v1062 = vpop.f32.mrf.mxu0
        %v1063 = vadd.f32 %v709, %v1062
        %1064 = vmatprep.mubr.f32.mxu0 0.0
        %1065 = vmatmul.mubr.f32.gmra.mxu0 %v836
        %v1066 = vpop.f32.mrf.mxu0
        %v1067 = vadd.f32 %v713, %v1066
        %v1068 = vpop.f32.mrf.mxu0
        %v1069 = vadd.f32 %v715, %v1068
        %1070 = vmatprep.mubr.f32.mxu0 0.0
        %1071 = vmatmul.mubr.f32.gmra.mxu0 %v839
        %v1072 = vpop.f32.mrf.mxu0
        %v1073 = vadd.f32 %v719, %v1072
        %v1074 = vpop.f32.mrf.mxu0
        %v1075 = vadd.f32 %v721, %v1074
        %1076 = vmatprep.mubr.f32.mxu0 0.0
        %1077 = vmatmul.mubr.f32.gmra.mxu0 %v842
        %v1078 = vpop.f32.mrf.mxu0
        %v1079 = vadd.f32 %v725, %v1078
        %v1080 = vpop.f32.mrf.mxu0
        %v1081 = vadd.f32 %v727, %v1080
        %1082 = vmatprep.mubr.f32.mxu0 0.0
        %1083 = vmatmul.mubr.f32.gmra.mxu0 %v845
        %v1084 = vpop.f32.mrf.mxu0
        %v1085 = vadd.f32 %v731, %v1084
        %v1086 = vpop.f32.mrf.mxu0
        %v1087 = vadd.f32 %v733, %v1086
        %1088 = vmatprep.mubr.f32.mxu0 0.0
        %1089 = vmatmul.mubr.f32.gmra.mxu0 %v848
        %v1090 = vpop.f32.mrf.mxu0
        %v1091 = vadd.f32 %v737, %v1090
        %v1092 = vpop.f32.mrf.mxu0
        %v1093 = vadd.f32 %v739, %v1092
        %1094 = vmatprep.mubr.f32.mxu0 0.0
        %1095 = vmatmul.mubr.f32.gmra.mxu0 %v851
        %v1096 = vpop.f32.mrf.mxu0
        %v1097 = vadd.f32 %v743, %v1096
        %v1098 = vpop.f32.mrf.mxu0
        %v1099 = vadd.f32 %v745, %v1098
        %1100 = vmatprep.mubr.f32.mxu0 0.0
        %1101 = vmatmul.mubr.f32.gmra.mxu0 %v854
        %v1102 = vpop.f32.mrf.mxu0
        %v1103 = vadd.f32 %v749, %v1102
        %v1104 = vpop.f32.mrf.mxu0
        %v1105 = vadd.f32 %v751, %v1104
        %1106 = vmatprep.mubr.f32.mxu0 0.0
        %1107 = vmatmul.mubr.f32.gmra.mxu0 %v857
        %v1108 = vpop.f32.mrf.mxu0
        %v1109 = vadd.f32 %v755, %v1108
        %v1110 = vpop.f32.mrf.mxu0
        %v1111 = vadd.f32 %v757, %v1110
        %1112 = vmatprep.mubr.f32.mxu0 0.0
        %1113 = vmatmul.mubr.f32.gmra.mxu0 %v860
        %v1114 = vpop.f32.mrf.mxu0
        %v1115 = vadd.f32 %v761, %v1114
        %v1116 = vpop.f32.mrf.mxu0
        %v1117 = vadd.f32 %v763, %v1116
        %1118 = vdwg.mxu0
        %v1119 = vlaneseq
        %v1120 = vand.u32 %v1119, 127
        %v1121 = vadd.s32 %v1120, 128
        %vm1122 = vcmp.ge.s32.totalorder %v1120, 192
        %vm1123 = vcmp.ge.s32.totalorder %v1121, 192
        %vm1124 = vcmp.lt.s32.totalorder %v1120, 224
        %vm1125 = vcmp.lt.s32.totalorder %v1121, 224
        %vm1126 = vmand %vm1122, %vm1124
        %vm1127 = vmand %vm1123, %vm1125
        %v1128 = vmax.f32 %v929, 0.0
        %v1129 = vmax.f32 %v931, 0.0
        %v1130 = vmax.f32 %v935, 0.0
        %v1131 = vmax.f32 %v937, 0.0
        %v1132 = vmax.f32 %v941, 0.0
        %v1133 = vmax.f32 %v943, 0.0
        %v1134 = vmax.f32 %v947, 0.0
        %v1135 = vmax.f32 %v949, 0.0
        %v1136 = vmax.f32 %v953, 0.0
        %v1137 = vmax.f32 %v955, 0.0
        %v1138 = vmax.f32 %v959, 0.0
        %v1139 = vmax.f32 %v961, 0.0
        %v1140 = vmax.f32 %v965, 0.0
        %v1141 = vmax.f32 %v967, 0.0
        %v1142 = vmax.f32 %v971, 0.0
        %v1143 = vmax.f32 %v973, 0.0
        %v1144 = vmax.f32 %v977, 0.0
        %v1145 = vmax.f32 %v979, 0.0
        %v1146 = vmax.f32 %v983, 0.0
        %v1147 = vmax.f32 %v985, 0.0
        %v1148 = vmax.f32 %v989, 0.0
        %v1149 = vmax.f32 %v991, 0.0
        %v1150 = vmax.f32 %v995, 0.0
        %v1151 = vmax.f32 %v997, 0.0
        %v1152 = vmax.f32 %v1001, 0.0
        %v1153 = vmax.f32 %v1003, 0.0
        %v1154 = vmax.f32 %v1007, 0.0
        %v1155 = vmax.f32 %v1009, 0.0
        %v1156 = vmax.f32 %v1013, 0.0
        %v1157 = vmax.f32 %v1015, 0.0
        %v1158 = vmax.f32 %v1019, 0.0
        %v1159 = vmax.f32 %v1021, 0.0
        %v1160 = vmax.f32 %v1025, 0.0
        %v1161 = vmax.f32 %v1027, 0.0
        %v1162 = vmax.f32 %v1031, 0.0
        %v1163 = vmax.f32 %v1033, 0.0
        %v1164 = vmax.f32 %v1037, 0.0
        %v1165 = vmax.f32 %v1039, 0.0
        %v1166 = vmax.f32 %v1043, 0.0
        %v1167 = vmax.f32 %v1045, 0.0
        %v1168 = vmax.f32 %v1049, 0.0
        %v1169 = vmax.f32 %v1051, 0.0
        %v1170 = vmax.f32 %v1055, 0.0
        %v1171 = vmax.f32 %v1057, 0.0
        %v1172 = vmax.f32 %v1061, 0.0
        %v1173 = vmax.f32 %v1063, 0.0
        %v1174 = vmax.f32 %v1067, 0.0
        %v1175 = vmax.f32 %v1069, 0.0
        %v1176 = vmax.f32 %v1073, 0.0
        %v1177 = vmax.f32 %v1075, 0.0
        %v1178 = vmax.f32 %v1079, 0.0
        %v1179 = vmax.f32 %v1081, 0.0
        %v1180 = vmax.f32 %v1085, 0.0
        %v1181 = vmax.f32 %v1087, 0.0
        %v1182 = vmax.f32 %v1091, 0.0
        %v1183 = vmax.f32 %v1093, 0.0
        %v1184 = vmax.f32 %v1097, 0.0
        %v1185 = vmax.f32 %v1099, 0.0
        %v1186 = vmax.f32 %v1103, 0.0
        %v1187 = vmax.f32 %v1105, 0.0
        %v1188 = vmax.f32 %v1109, 0.0
        %v1189 = vmax.f32 %v1111, 0.0
        %v1190 = vmax.f32 %v1115, 0.0
        %v1191 = vmax.f32 %v1117, 0.0
        %v1192 = vsel %vm1126, %v929, %v1128
        %v1193 = vsel %vm1127, %v931, %v1129
        %v1194 = vsel %vm1126, %v935, %v1130
        %v1195 = vsel %vm1127, %v937, %v1131
        %v1196 = vsel %vm1126, %v941, %v1132
        %v1197 = vsel %vm1127, %v943, %v1133
        %v1198 = vsel %vm1126, %v947, %v1134
        %v1199 = vsel %vm1127, %v949, %v1135
        %v1200 = vsel %vm1126, %v953, %v1136
        %v1201 = vsel %vm1127, %v955, %v1137
        %v1202 = vsel %vm1126, %v959, %v1138
        %v1203 = vsel %vm1127, %v961, %v1139
        %v1204 = vsel %vm1126, %v965, %v1140
        %v1205 = vsel %vm1127, %v967, %v1141
        %v1206 = vsel %vm1126, %v971, %v1142
        %v1207 = vsel %vm1127, %v973, %v1143
        %v1208 = vsel %vm1126, %v977, %v1144
        %v1209 = vsel %vm1127, %v979, %v1145
        %v1210 = vsel %vm1126, %v983, %v1146
        %v1211 = vsel %vm1127, %v985, %v1147
        %v1212 = vsel %vm1126, %v989, %v1148
        %v1213 = vsel %vm1127, %v991, %v1149
        %v1214 = vsel %vm1126, %v995, %v1150
        %v1215 = vsel %vm1127, %v997, %v1151
        %v1216 = vsel %vm1126, %v1001, %v1152
        %v1217 = vsel %vm1127, %v1003, %v1153
        %v1218 = vsel %vm1126, %v1007, %v1154
        %v1219 = vsel %vm1127, %v1009, %v1155
        %v1220 = vsel %vm1126, %v1013, %v1156
        %v1221 = vsel %vm1127, %v1015, %v1157
        %v1222 = vsel %vm1126, %v1019, %v1158
        %v1223 = vsel %vm1127, %v1021, %v1159
        %v1224 = vsel %vm1126, %v1025, %v1160
        %v1225 = vsel %vm1127, %v1027, %v1161
        %v1226 = vsel %vm1126, %v1031, %v1162
        %v1227 = vsel %vm1127, %v1033, %v1163
        %v1228 = vsel %vm1126, %v1037, %v1164
        %v1229 = vsel %vm1127, %v1039, %v1165
        %v1230 = vsel %vm1126, %v1043, %v1166
        %v1231 = vsel %vm1127, %v1045, %v1167
        %v1232 = vsel %vm1126, %v1049, %v1168
        %v1233 = vsel %vm1127, %v1051, %v1169
        %v1234 = vsel %vm1126, %v1055, %v1170
        %v1235 = vsel %vm1127, %v1057, %v1171
        %v1236 = vsel %vm1126, %v1061, %v1172
        %v1237 = vsel %vm1127, %v1063, %v1173
        %v1238 = vsel %vm1126, %v1067, %v1174
        %v1239 = vsel %vm1127, %v1069, %v1175
        %v1240 = vsel %vm1126, %v1073, %v1176
        %v1241 = vsel %vm1127, %v1075, %v1177
        %v1242 = vsel %vm1126, %v1079, %v1178
        %v1243 = vsel %vm1127, %v1081, %v1179
        %v1244 = vsel %vm1126, %v1085, %v1180
        %v1245 = vsel %vm1127, %v1087, %v1181
        %v1246 = vsel %vm1126, %v1091, %v1182
        %v1247 = vsel %vm1127, %v1093, %v1183
        %v1248 = vsel %vm1126, %v1097, %v1184
        %v1249 = vsel %vm1127, %v1099, %v1185
        %v1250 = vsel %vm1126, %v1103, %v1186
        %v1251 = vsel %vm1127, %v1105, %v1187
        %v1252 = vsel %vm1126, %v1109, %v1188
        %v1253 = vsel %vm1127, %v1111, %v1189
        %v1254 = vsel %vm1126, %v1115, %v1190
        %v1255 = vsel %vm1127, %v1117, %v1191
        %v1256 = vld [vmem:[%s4] sm:$0xff]
        %v1257 = vld [vmem:[%s4 + $0x8] sm:$0xff]
        %v1258 = vld [vmem:[%s4 + $0x10] sm:$0xff]
        %v1259 = vld [vmem:[%s4 + $0x18] sm:$0xff]
        %v1260 = vld [vmem:[%s4 + $0x20] sm:$0xff]
        %v1261 = vld [vmem:[%s4 + $0x28] sm:$0xff]
        %v1262 = vld [vmem:[%s4 + $0x30] sm:$0xff]
        %v1263 = vld [vmem:[%s4 + $0x38] sm:$0xff]
        %v1264 = vld [vmem:[%s4 + $0x40] sm:$0xff]
        %v1265 = vld [vmem:[%s4 + $0x48] sm:$0xff]
        %v1266 = vld [vmem:[%s4 + $0x50] sm:$0xff]
        %v1267 = vld [vmem:[%s4 + $0x58] sm:$0xff]
        %v1268 = vld [vmem:[%s4 + $0x60] sm:$0xff]
        %v1269 = vld [vmem:[%s4 + $0x68] sm:$0xff]
        %v1270 = vld [vmem:[%s4 + $0x70] sm:$0xff]
        %v1271 = vld [vmem:[%s4 + $0x78] sm:$0xff]
        %v1272 = vld [vmem:[%s4 + $0x80] sm:$0xff]
        %v1273 = vld [vmem:[%s4 + $0x88] sm:$0xff]
        %v1274 = vld [vmem:[%s4 + $0x90] sm:$0xff]
        %v1275 = vld [vmem:[%s4 + $0x98] sm:$0xff]
        %v1276 = vld [vmem:[%s4 + $0xa0] sm:$0xff]
        %v1277 = vld [vmem:[%s4 + $0xa8] sm:$0xff]
        %v1278 = vld [vmem:[%s4 + $0xb0] sm:$0xff]
        %v1279 = vld [vmem:[%s4 + $0xb8] sm:$0xff]
        %v1280 = vld [vmem:[%s4 + $0xc0] sm:$0xff]
        %v1281 = vld [vmem:[%s4 + $0xc8] sm:$0xff]
        %v1282 = vld [vmem:[%s4 + $0xd0] sm:$0xff]
        %v1283 = vld [vmem:[%s4 + $0xd8] sm:$0xff]
        %v1284 = vld [vmem:[%s4 + $0xe0] sm:$0xff]
        %v1285 = vld [vmem:[%s4 + $0xe8] sm:$0xff]
        %v1286 = vld [vmem:[%s4 + $0xf0] sm:$0xff]
        %v1287 = vld [vmem:[%s4 + $0xf8] sm:$0xff]
        %1288 = vmatprep.subr.mxu0 0.0
        %1289 = vmatpush1.msra.mxu0 %v1271
        %1290 = vmatprep.subr.mxu0 0.0
        %1291 = vmatpush1.msra.mxu0 %v1270
        %1292 = vmatprep.subr.mxu0 0.0
        %1293 = vmatpush1.msra.mxu0 %v1269
        %1294 = vmatprep.subr.mxu0 0.0
        %1295 = vmatpush1.msra.mxu0 %v1268
        %1296 = vmatprep.subr.mxu0 0.0
        %1297 = vmatpush1.msra.mxu0 %v1267
        %1298 = vmatprep.subr.mxu0 0.0
        %1299 = vmatpush1.msra.mxu0 %v1266
        %1300 = vmatprep.subr.mxu0 0.0
        %1301 = vmatpush1.msra.mxu0 %v1265
        %1302 = vmatprep.subr.mxu0 0.0
        %1303 = vmatpush1.msra.mxu0 %v1264
        %1304 = vmatprep.subr.mxu0 0.0
        %1305 = vmatpush1.msra.mxu0 %v1263
        %1306 = vmatprep.subr.mxu0 0.0
        %1307 = vmatpush1.msra.mxu0 %v1262
        %1308 = vmatprep.subr.mxu0 0.0
        %1309 = vmatpush1.msra.mxu0 %v1261
        %1310 = vmatprep.subr.mxu0 0.0
        %1311 = vmatpush1.msra.mxu0 %v1260
        %1312 = vmatprep.subr.mxu0 0.0
        %1313 = vmatpush1.msra.mxu0 %v1259
        %1314 = vmatprep.subr.mxu0 0.0
        %1315 = vmatpush1.msra.mxu0 %v1258
        %1316 = vmatprep.subr.mxu0 0.0
        %1317 = vmatpush1.msra.mxu0 %v1257
        %1318 = vmatprep.subr.mxu0 0.0
        %1319 = vmatpush1.msra.mxu0 %v1256
        %1320 = vmatprep.subr.mxu0 0.0
        %1321 = vmatpush2.msra.mxu0 %v1287
        %1322 = vmatprep.subr.mxu0 0.0
        %1323 = vmatpush2.msra.mxu0 %v1286
        %1324 = vmatprep.subr.mxu0 0.0
        %1325 = vmatpush2.msra.mxu0 %v1285
        %1326 = vmatprep.subr.mxu0 0.0
        %1327 = vmatpush2.msra.mxu0 %v1284
        %1328 = vmatprep.subr.mxu0 0.0
        %1329 = vmatpush2.msra.mxu0 %v1283
        %1330 = vmatprep.subr.mxu0 0.0
        %1331 = vmatpush2.msra.mxu0 %v1282
        %1332 = vmatprep.subr.mxu0 0.0
        %1333 = vmatpush2.msra.mxu0 %v1281
        %1334 = vmatprep.subr.mxu0 0.0
        %1335 = vmatpush2.msra.mxu0 %v1280
        %1336 = vmatprep.subr.mxu0 0.0
        %1337 = vmatpush2.msra.mxu0 %v1279
        %1338 = vmatprep.subr.mxu0 0.0
        %1339 = vmatpush2.msra.mxu0 %v1278
        %1340 = vmatprep.subr.mxu0 0.0
        %1341 = vmatpush2.msra.mxu0 %v1277
        %1342 = vmatprep.subr.mxu0 0.0
        %1343 = vmatpush2.msra.mxu0 %v1276
        %1344 = vmatprep.subr.mxu0 0.0
        %1345 = vmatpush2.msra.mxu0 %v1275
        %1346 = vmatprep.subr.mxu0 0.0
        %1347 = vmatpush2.msra.mxu0 %v1274
        %1348 = vmatprep.subr.mxu0 0.0
        %1349 = vmatpush2.msra.mxu0 %v1273
        %1350 = vmatprep.subr.mxu0 0.0
        %1351 = vmatpush2.msra.mxu0 %v1272
        %1352 = vmatprep.mubr.f32.mxu0 %v1193
        %1353 = vmatmul.mubr.f32.gmra.mxu0 %v1192
        %v1354 = vpop.f32.mrf.mxu0
        %v1355 = vadd.f32 0.0, %v1354
        %v1356 = vpop.f32.mrf.mxu0
        %1357 = vmatprep.mubr.f32.mxu0 %v1195
        %1358 = vmatmul.mubr.f32.gmra.mxu0 %v1194
        %v1359 = vpop.f32.mrf.mxu0
        %v1360 = vadd.f32 0.0, %v1359
        %v1361 = vpop.f32.mrf.mxu0
        %1362 = vmatprep.mubr.f32.mxu0 %v1197
        %1363 = vmatmul.mubr.f32.gmra.mxu0 %v1196
        %v1364 = vpop.f32.mrf.mxu0
        %v1365 = vadd.f32 0.0, %v1364
        %v1366 = vpop.f32.mrf.mxu0
        %1367 = vmatprep.mubr.f32.mxu0 %v1199
        %1368 = vmatmul.mubr.f32.gmra.mxu0 %v1198
        %v1369 = vpop.f32.mrf.mxu0
        %v1370 = vadd.f32 0.0, %v1369
        %v1371 = vpop.f32.mrf.mxu0
        %1372 = vmatprep.mubr.f32.mxu0 %v1201
        %1373 = vmatmul.mubr.f32.gmra.mxu0 %v1200
        %v1374 = vpop.f32.mrf.mxu0
        %v1375 = vadd.f32 0.0, %v1374
        %v1376 = vpop.f32.mrf.mxu0
        %1377 = vmatprep.mubr.f32.mxu0 %v1203
        %1378 = vmatmul.mubr.f32.gmra.mxu0 %v1202
        %v1379 = vpop.f32.mrf.mxu0
        %v1380 = vadd.f32 0.0, %v1379
        %v1381 = vpop.f32.mrf.mxu0
        %1382 = vmatprep.mubr.f32.mxu0 %v1205
        %1383 = vmatmul.mubr.f32.gmra.mxu0 %v1204
        %v1384 = vpop.f32.mrf.mxu0
        %v1385 = vadd.f32 0.0, %v1384
        %v1386 = vpop.f32.mrf.mxu0
        %1387 = vmatprep.mubr.f32.mxu0 %v1207
        %1388 = vmatmul.mubr.f32.gmra.mxu0 %v1206
        %v1389 = vpop.f32.mrf.mxu0
        %v1390 = vadd.f32 0.0, %v1389
        %v1391 = vpop.f32.mrf.mxu0
        %1392 = vmatprep.mubr.f32.mxu0 %v1209
        %1393 = vmatmul.mubr.f32.gmra.mxu0 %v1208
        %v1394 = vpop.f32.mrf.mxu0
        %v1395 = vadd.f32 0.0, %v1394
        %v1396 = vpop.f32.mrf.mxu0
        %1397 = vmatprep.mubr.f32.mxu0 %v1211
        %1398 = vmatmul.mubr.f32.gmra.mxu0 %v1210
        %v1399 = vpop.f32.mrf.mxu0
        %v1400 = vadd.f32 0.0, %v1399
        %v1401 = vpop.f32.mrf.mxu0
        %1402 = vmatprep.mubr.f32.mxu0 %v1213
        %1403 = vmatmul.mubr.f32.gmra.mxu0 %v1212
        %v1404 = vpop.f32.mrf.mxu0
        %v1405 = vadd.f32 0.0, %v1404
        %v1406 = vpop.f32.mrf.mxu0
        %1407 = vmatprep.mubr.f32.mxu0 %v1215
        %1408 = vmatmul.mubr.f32.gmra.mxu0 %v1214
        %v1409 = vpop.f32.mrf.mxu0
        %v1410 = vadd.f32 0.0, %v1409
        %v1411 = vpop.f32.mrf.mxu0
        %1412 = vmatprep.mubr.f32.mxu0 %v1217
        %1413 = vmatmul.mubr.f32.gmra.mxu0 %v1216
        %v1414 = vpop.f32.mrf.mxu0
        %v1415 = vadd.f32 0.0, %v1414
        %v1416 = vpop.f32.mrf.mxu0
        %1417 = vmatprep.mubr.f32.mxu0 %v1219
        %1418 = vmatmul.mubr.f32.gmra.mxu0 %v1218
        %v1419 = vpop.f32.mrf.mxu0
        %v1420 = vadd.f32 0.0, %v1419
        %v1421 = vpop.f32.mrf.mxu0
        %1422 = vmatprep.mubr.f32.mxu0 %v1221
        %1423 = vmatmul.mubr.f32.gmra.mxu0 %v1220
        %v1424 = vpop.f32.mrf.mxu0
        %v1425 = vadd.f32 0.0, %v1424
        %v1426 = vpop.f32.mrf.mxu0
        %1427 = vmatprep.mubr.f32.mxu0 %v1223
        %1428 = vmatmul.mubr.f32.gmra.mxu0 %v1222
        %v1429 = vpop.f32.mrf.mxu0
        %v1430 = vadd.f32 0.0, %v1429
        %v1431 = vpop.f32.mrf.mxu0
        %1432 = vmatprep.mubr.f32.mxu0 %v1225
        %1433 = vmatmul.mubr.f32.gmra.mxu0 %v1224
        %v1434 = vpop.f32.mrf.mxu0
        %v1435 = vadd.f32 0.0, %v1434
        %v1436 = vpop.f32.mrf.mxu0
        %1437 = vmatprep.mubr.f32.mxu0 %v1227
        %1438 = vmatmul.mubr.f32.gmra.mxu0 %v1226
        %v1439 = vpop.f32.mrf.mxu0
        %v1440 = vadd.f32 0.0, %v1439
        %v1441 = vpop.f32.mrf.mxu0
        %1442 = vmatprep.mubr.f32.mxu0 %v1229
        %1443 = vmatmul.mubr.f32.gmra.mxu0 %v1228
        %v1444 = vpop.f32.mrf.mxu0
        %v1445 = vadd.f32 0.0, %v1444
        %v1446 = vpop.f32.mrf.mxu0
        %1447 = vmatprep.mubr.f32.mxu0 %v1231
        %1448 = vmatmul.mubr.f32.gmra.mxu0 %v1230
        %v1449 = vpop.f32.mrf.mxu0
        %v1450 = vadd.f32 0.0, %v1449
        %v1451 = vpop.f32.mrf.mxu0
        %1452 = vmatprep.mubr.f32.mxu0 %v1233
        %1453 = vmatmul.mubr.f32.gmra.mxu0 %v1232
        %v1454 = vpop.f32.mrf.mxu0
        %v1455 = vadd.f32 0.0, %v1454
        %v1456 = vpop.f32.mrf.mxu0
        %1457 = vmatprep.mubr.f32.mxu0 %v1235
        %1458 = vmatmul.mubr.f32.gmra.mxu0 %v1234
        %v1459 = vpop.f32.mrf.mxu0
        %v1460 = vadd.f32 0.0, %v1459
        %v1461 = vpop.f32.mrf.mxu0
        %1462 = vmatprep.mubr.f32.mxu0 %v1237
        %1463 = vmatmul.mubr.f32.gmra.mxu0 %v1236
        %v1464 = vpop.f32.mrf.mxu0
        %v1465 = vadd.f32 0.0, %v1464
        %v1466 = vpop.f32.mrf.mxu0
        %1467 = vmatprep.mubr.f32.mxu0 %v1239
        %1468 = vmatmul.mubr.f32.gmra.mxu0 %v1238
        %v1469 = vpop.f32.mrf.mxu0
        %v1470 = vadd.f32 0.0, %v1469
        %v1471 = vpop.f32.mrf.mxu0
        %1472 = vmatprep.mubr.f32.mxu0 %v1241
        %1473 = vmatmul.mubr.f32.gmra.mxu0 %v1240
        %v1474 = vpop.f32.mrf.mxu0
        %v1475 = vadd.f32 0.0, %v1474
        %v1476 = vpop.f32.mrf.mxu0
        %1477 = vmatprep.mubr.f32.mxu0 %v1243
        %1478 = vmatmul.mubr.f32.gmra.mxu0 %v1242
        %v1479 = vpop.f32.mrf.mxu0
        %v1480 = vadd.f32 0.0, %v1479
        %v1481 = vpop.f32.mrf.mxu0
        %1482 = vmatprep.mubr.f32.mxu0 %v1245
        %1483 = vmatmul.mubr.f32.gmra.mxu0 %v1244
        %v1484 = vpop.f32.mrf.mxu0
        %v1485 = vadd.f32 0.0, %v1484
        %v1486 = vpop.f32.mrf.mxu0
        %1487 = vmatprep.mubr.f32.mxu0 %v1247
        %1488 = vmatmul.mubr.f32.gmra.mxu0 %v1246
        %v1489 = vpop.f32.mrf.mxu0
        %v1490 = vadd.f32 0.0, %v1489
        %v1491 = vpop.f32.mrf.mxu0
        %1492 = vmatprep.mubr.f32.mxu0 %v1249
        %1493 = vmatmul.mubr.f32.gmra.mxu0 %v1248
        %v1494 = vpop.f32.mrf.mxu0
        %v1495 = vadd.f32 0.0, %v1494
        %v1496 = vpop.f32.mrf.mxu0
        %1497 = vmatprep.mubr.f32.mxu0 %v1251
        %1498 = vmatmul.mubr.f32.gmra.mxu0 %v1250
        %v1499 = vpop.f32.mrf.mxu0
        %v1500 = vadd.f32 0.0, %v1499
        %v1501 = vpop.f32.mrf.mxu0
        %1502 = vmatprep.mubr.f32.mxu0 %v1253
        %1503 = vmatmul.mubr.f32.gmra.mxu0 %v1252
        %v1504 = vpop.f32.mrf.mxu0
        %v1505 = vadd.f32 0.0, %v1504
        %v1506 = vpop.f32.mrf.mxu0
        %1507 = vmatprep.mubr.f32.mxu0 %v1255
        %1508 = vmatmul.mubr.f32.gmra.mxu0 %v1254
        %v1509 = vpop.f32.mrf.mxu0
        %v1510 = vadd.f32 0.0, %v1509
        %v1511 = vpop.f32.mrf.mxu0
        %1512 = vdwg.mxu0
        %v1513 = vmul.f32 %v1355, %v1355
        %v1514 = vmul.f32 %v1360, %v1360
        %v1515 = vmul.f32 %v1365, %v1365
        %v1516 = vmul.f32 %v1370, %v1370
        %v1517 = vmul.f32 %v1375, %v1375
        %v1518 = vmul.f32 %v1380, %v1380
        %v1519 = vmul.f32 %v1385, %v1385
        %v1520 = vmul.f32 %v1390, %v1390
        %v1521 = vmul.f32 %v1395, %v1395
        %v1522 = vmul.f32 %v1400, %v1400
        %v1523 = vmul.f32 %v1405, %v1405
        %v1524 = vmul.f32 %v1410, %v1410
        %v1525 = vmul.f32 %v1415, %v1415
        %v1526 = vmul.f32 %v1420, %v1420
        %v1527 = vmul.f32 %v1425, %v1425
        %v1528 = vmul.f32 %v1430, %v1430
        %v1529 = vmul.f32 %v1435, %v1435
        %v1530 = vmul.f32 %v1440, %v1440
        %v1531 = vmul.f32 %v1445, %v1445
        %v1532 = vmul.f32 %v1450, %v1450
        %v1533 = vmul.f32 %v1455, %v1455
        %v1534 = vmul.f32 %v1460, %v1460
        %v1535 = vmul.f32 %v1465, %v1465
        %v1536 = vmul.f32 %v1470, %v1470
        %v1537 = vmul.f32 %v1475, %v1475
        %v1538 = vmul.f32 %v1480, %v1480
        %v1539 = vmul.f32 %v1485, %v1485
        %v1540 = vmul.f32 %v1490, %v1490
        %v1541 = vmul.f32 %v1495, %v1495
        %v1542 = vmul.f32 %v1500, %v1500
        %v1543 = vmul.f32 %v1505, %v1505
        %v1544 = vmul.f32 %v1510, %v1510
        %v1545 = vld [vmem:[%s6] sm:$0xff]
        %v1546 = vld [vmem:[%s6 + $0x8] sm:$0xff]
        %v1547 = vld [vmem:[%s6 + $0x10] sm:$0xff]
        %v1548 = vld [vmem:[%s6 + $0x18] sm:$0xff]
        %v1549 = vld [vmem:[%s6 + $0x20] sm:$0xff]
        %v1550 = vld [vmem:[%s6 + $0x28] sm:$0xff]
        %v1551 = vld [vmem:[%s6 + $0x30] sm:$0xff]
        %v1552 = vld [vmem:[%s6 + $0x38] sm:$0xff]
        %v1553 = vld [vmem:[%s6 + $0x40] sm:$0xff]
        %v1554 = vld [vmem:[%s6 + $0x48] sm:$0xff]
        %v1555 = vld [vmem:[%s6 + $0x50] sm:$0xff]
        %v1556 = vld [vmem:[%s6 + $0x58] sm:$0xff]
        %v1557 = vld [vmem:[%s6 + $0x60] sm:$0xff]
        %v1558 = vld [vmem:[%s6 + $0x68] sm:$0xff]
        %v1559 = vld [vmem:[%s6 + $0x70] sm:$0xff]
        %v1560 = vld [vmem:[%s6 + $0x78] sm:$0xff]
        %1561 = vmatprep.subr.mxu0 0.0
        %1562 = vmatpush1.msra.mxu0 %v1560
        %1563 = vmatprep.subr.mxu0 0.0
        %1564 = vmatpush1.msra.mxu0 %v1559
        %1565 = vmatprep.subr.mxu0 0.0
        %1566 = vmatpush1.msra.mxu0 %v1558
        %1567 = vmatprep.subr.mxu0 0.0
        %1568 = vmatpush1.msra.mxu0 %v1557
        %1569 = vmatprep.subr.mxu0 0.0
        %1570 = vmatpush1.msra.mxu0 %v1556
        %1571 = vmatprep.subr.mxu0 0.0
        %1572 = vmatpush1.msra.mxu0 %v1555
        %1573 = vmatprep.subr.mxu0 0.0
        %1574 = vmatpush1.msra.mxu0 %v1554
        %1575 = vmatprep.subr.mxu0 0.0
        %1576 = vmatpush1.msra.mxu0 %v1553
        %1577 = vmatprep.subr.mxu0 0.0
        %1578 = vmatpush1.msra.mxu0 %v1552
        %1579 = vmatprep.subr.mxu0 0.0
        %1580 = vmatpush1.msra.mxu0 %v1551
        %1581 = vmatprep.subr.mxu0 0.0
        %1582 = vmatpush1.msra.mxu0 %v1550
        %1583 = vmatprep.subr.mxu0 0.0
        %1584 = vmatpush1.msra.mxu0 %v1549
        %1585 = vmatprep.subr.mxu0 0.0
        %1586 = vmatpush1.msra.mxu0 %v1548
        %1587 = vmatprep.subr.mxu0 0.0
        %1588 = vmatpush1.msra.mxu0 %v1547
        %1589 = vmatprep.subr.mxu0 0.0
        %1590 = vmatpush1.msra.mxu0 %v1546
        %1591 = vmatprep.subr.mxu0 0.0
        %1592 = vmatpush1.msra.mxu0 %v1545
        %1593 = vmatprep.subr.mxu0 0.0
        %1594 = vmatpush2.msra.mxu0 0.0
        %1595 = vmatprep.subr.mxu0 0.0
        %1596 = vmatpush2.msra.mxu0 0.0
        %1597 = vmatprep.subr.mxu0 0.0
        %1598 = vmatpush2.msra.mxu0 0.0
        %1599 = vmatprep.subr.mxu0 0.0
        %1600 = vmatpush2.msra.mxu0 0.0
        %1601 = vmatprep.subr.mxu0 0.0
        %1602 = vmatpush2.msra.mxu0 0.0
        %1603 = vmatprep.subr.mxu0 0.0
        %1604 = vmatpush2.msra.mxu0 0.0
        %1605 = vmatprep.subr.mxu0 0.0
        %1606 = vmatpush2.msra.mxu0 0.0
        %1607 = vmatprep.subr.mxu0 0.0
        %1608 = vmatpush2.msra.mxu0 0.0
        %1609 = vmatprep.subr.mxu0 0.0
        %1610 = vmatpush2.msra.mxu0 0.0
        %1611 = vmatprep.subr.mxu0 0.0
        %1612 = vmatpush2.msra.mxu0 0.0
        %1613 = vmatprep.subr.mxu0 0.0
        %1614 = vmatpush2.msra.mxu0 0.0
        %1615 = vmatprep.subr.mxu0 0.0
        %1616 = vmatpush2.msra.mxu0 0.0
        %1617 = vmatprep.subr.mxu0 0.0
        %1618 = vmatpush2.msra.mxu0 0.0
        %1619 = vmatprep.subr.mxu0 0.0
        %1620 = vmatpush2.msra.mxu0 0.0
        %1621 = vmatprep.subr.mxu0 0.0
        %1622 = vmatpush2.msra.mxu0 0.0
        %1623 = vmatprep.subr.mxu0 0.0
        %1624 = vmatpush2.msra.mxu0 0.0
        %1625 = vmatprep.mubr.f32.mxu0 0.0
        %1626 = vmatmul.mubr.f32.gmra.mxu0 %v1513
        %v1627 = vpop.f32.mrf.mxu0
        %v1628 = vadd.f32 0.0, %v1627
        %v1629 = vpop.f32.mrf.mxu0
        %1630 = vmatprep.mubr.f32.mxu0 0.0
        %1631 = vmatmul.mubr.f32.gmra.mxu0 %v1514
        %v1632 = vpop.f32.mrf.mxu0
        %v1633 = vadd.f32 0.0, %v1632
        %v1634 = vpop.f32.mrf.mxu0
        %1635 = vmatprep.mubr.f32.mxu0 0.0
        %1636 = vmatmul.mubr.f32.gmra.mxu0 %v1515
        %v1637 = vpop.f32.mrf.mxu0
        %v1638 = vadd.f32 0.0, %v1637
        %v1639 = vpop.f32.mrf.mxu0
        %1640 = vmatprep.mubr.f32.mxu0 0.0
        %1641 = vmatmul.mubr.f32.gmra.mxu0 %v1516
        %v1642 = vpop.f32.mrf.mxu0
        %v1643 = vadd.f32 0.0, %v1642
        %v1644 = vpop.f32.mrf.mxu0
        %1645 = vmatprep.mubr.f32.mxu0 0.0
        %1646 = vmatmul.mubr.f32.gmra.mxu0 %v1517
        %v1647 = vpop.f32.mrf.mxu0
        %v1648 = vadd.f32 0.0, %v1647
        %v1649 = vpop.f32.mrf.mxu0
        %1650 = vmatprep.mubr.f32.mxu0 0.0
        %1651 = vmatmul.mubr.f32.gmra.mxu0 %v1518
        %v1652 = vpop.f32.mrf.mxu0
        %v1653 = vadd.f32 0.0, %v1652
        %v1654 = vpop.f32.mrf.mxu0
        %1655 = vmatprep.mubr.f32.mxu0 0.0
        %1656 = vmatmul.mubr.f32.gmra.mxu0 %v1519
        %v1657 = vpop.f32.mrf.mxu0
        %v1658 = vadd.f32 0.0, %v1657
        %v1659 = vpop.f32.mrf.mxu0
        %1660 = vmatprep.mubr.f32.mxu0 0.0
        %1661 = vmatmul.mubr.f32.gmra.mxu0 %v1520
        %v1662 = vpop.f32.mrf.mxu0
        %v1663 = vadd.f32 0.0, %v1662
        %v1664 = vpop.f32.mrf.mxu0
        %1665 = vmatprep.mubr.f32.mxu0 0.0
        %1666 = vmatmul.mubr.f32.gmra.mxu0 %v1521
        %v1667 = vpop.f32.mrf.mxu0
        %v1668 = vadd.f32 0.0, %v1667
        %v1669 = vpop.f32.mrf.mxu0
        %1670 = vmatprep.mubr.f32.mxu0 0.0
        %1671 = vmatmul.mubr.f32.gmra.mxu0 %v1522
        %v1672 = vpop.f32.mrf.mxu0
        %v1673 = vadd.f32 0.0, %v1672
        %v1674 = vpop.f32.mrf.mxu0
        %1675 = vmatprep.mubr.f32.mxu0 0.0
        %1676 = vmatmul.mubr.f32.gmra.mxu0 %v1523
        %v1677 = vpop.f32.mrf.mxu0
        %v1678 = vadd.f32 0.0, %v1677
        %v1679 = vpop.f32.mrf.mxu0
        %1680 = vmatprep.mubr.f32.mxu0 0.0
        %1681 = vmatmul.mubr.f32.gmra.mxu0 %v1524
        %v1682 = vpop.f32.mrf.mxu0
        %v1683 = vadd.f32 0.0, %v1682
        %v1684 = vpop.f32.mrf.mxu0
        %1685 = vmatprep.mubr.f32.mxu0 0.0
        %1686 = vmatmul.mubr.f32.gmra.mxu0 %v1525
        %v1687 = vpop.f32.mrf.mxu0
        %v1688 = vadd.f32 0.0, %v1687
        %v1689 = vpop.f32.mrf.mxu0
        %1690 = vmatprep.mubr.f32.mxu0 0.0
        %1691 = vmatmul.mubr.f32.gmra.mxu0 %v1526
        %v1692 = vpop.f32.mrf.mxu0
        %v1693 = vadd.f32 0.0, %v1692
        %v1694 = vpop.f32.mrf.mxu0
        %1695 = vmatprep.mubr.f32.mxu0 0.0
        %1696 = vmatmul.mubr.f32.gmra.mxu0 %v1527
        %v1697 = vpop.f32.mrf.mxu0
        %v1698 = vadd.f32 0.0, %v1697
        %v1699 = vpop.f32.mrf.mxu0
        %1700 = vmatprep.mubr.f32.mxu0 0.0
        %1701 = vmatmul.mubr.f32.gmra.mxu0 %v1528
        %v1702 = vpop.f32.mrf.mxu0
        %v1703 = vadd.f32 0.0, %v1702
        %v1704 = vpop.f32.mrf.mxu0
        %1705 = vmatprep.mubr.f32.mxu0 0.0
        %1706 = vmatmul.mubr.f32.gmra.mxu0 %v1529
        %v1707 = vpop.f32.mrf.mxu0
        %v1708 = vadd.f32 0.0, %v1707
        %v1709 = vpop.f32.mrf.mxu0
        %1710 = vmatprep.mubr.f32.mxu0 0.0
        %1711 = vmatmul.mubr.f32.gmra.mxu0 %v1530
        %v1712 = vpop.f32.mrf.mxu0
        %v1713 = vadd.f32 0.0, %v1712
        %v1714 = vpop.f32.mrf.mxu0
        %1715 = vmatprep.mubr.f32.mxu0 0.0
        %1716 = vmatmul.mubr.f32.gmra.mxu0 %v1531
        %v1717 = vpop.f32.mrf.mxu0
        %v1718 = vadd.f32 0.0, %v1717
        %v1719 = vpop.f32.mrf.mxu0
        %1720 = vmatprep.mubr.f32.mxu0 0.0
        %1721 = vmatmul.mubr.f32.gmra.mxu0 %v1532
        %v1722 = vpop.f32.mrf.mxu0
        %v1723 = vadd.f32 0.0, %v1722
        %v1724 = vpop.f32.mrf.mxu0
        %1725 = vmatprep.mubr.f32.mxu0 0.0
        %1726 = vmatmul.mubr.f32.gmra.mxu0 %v1533
        %v1727 = vpop.f32.mrf.mxu0
        %v1728 = vadd.f32 0.0, %v1727
        %v1729 = vpop.f32.mrf.mxu0
        %1730 = vmatprep.mubr.f32.mxu0 0.0
        %1731 = vmatmul.mubr.f32.gmra.mxu0 %v1534
        %v1732 = vpop.f32.mrf.mxu0
        %v1733 = vadd.f32 0.0, %v1732
        %v1734 = vpop.f32.mrf.mxu0
        %1735 = vmatprep.mubr.f32.mxu0 0.0
        %1736 = vmatmul.mubr.f32.gmra.mxu0 %v1535
        %v1737 = vpop.f32.mrf.mxu0
        %v1738 = vadd.f32 0.0, %v1737
        %v1739 = vpop.f32.mrf.mxu0
        %1740 = vmatprep.mubr.f32.mxu0 0.0
        %1741 = vmatmul.mubr.f32.gmra.mxu0 %v1536
        %v1742 = vpop.f32.mrf.mxu0
        %v1743 = vadd.f32 0.0, %v1742
        %v1744 = vpop.f32.mrf.mxu0
        %1745 = vmatprep.mubr.f32.mxu0 0.0
        %1746 = vmatmul.mubr.f32.gmra.mxu0 %v1537
        %v1747 = vpop.f32.mrf.mxu0
        %v1748 = vadd.f32 0.0, %v1747
        %v1749 = vpop.f32.mrf.mxu0
        %1750 = vmatprep.mubr.f32.mxu0 0.0
        %1751 = vmatmul.mubr.f32.gmra.mxu0 %v1538
        %v1752 = vpop.f32.mrf.mxu0
        %v1753 = vadd.f32 0.0, %v1752
        %v1754 = vpop.f32.mrf.mxu0
        %1755 = vmatprep.mubr.f32.mxu0 0.0
        %1756 = vmatmul.mubr.f32.gmra.mxu0 %v1539
        %v1757 = vpop.f32.mrf.mxu0
        %v1758 = vadd.f32 0.0, %v1757
        %v1759 = vpop.f32.mrf.mxu0
        %1760 = vmatprep.mubr.f32.mxu0 0.0
        %1761 = vmatmul.mubr.f32.gmra.mxu0 %v1540
        %v1762 = vpop.f32.mrf.mxu0
        %v1763 = vadd.f32 0.0, %v1762
        %v1764 = vpop.f32.mrf.mxu0
        %1765 = vmatprep.mubr.f32.mxu0 0.0
        %1766 = vmatmul.mubr.f32.gmra.mxu0 %v1541
        %v1767 = vpop.f32.mrf.mxu0
        %v1768 = vadd.f32 0.0, %v1767
        %v1769 = vpop.f32.mrf.mxu0
        %1770 = vmatprep.mubr.f32.mxu0 0.0
        %1771 = vmatmul.mubr.f32.gmra.mxu0 %v1542
        %v1772 = vpop.f32.mrf.mxu0
        %v1773 = vadd.f32 0.0, %v1772
        %v1774 = vpop.f32.mrf.mxu0
        %1775 = vmatprep.mubr.f32.mxu0 0.0
        %1776 = vmatmul.mubr.f32.gmra.mxu0 %v1543
        %v1777 = vpop.f32.mrf.mxu0
        %v1778 = vadd.f32 0.0, %v1777
        %v1779 = vpop.f32.mrf.mxu0
        %1780 = vmatprep.mubr.f32.mxu0 0.0
        %1781 = vmatmul.mubr.f32.gmra.mxu0 %v1544
        %v1782 = vpop.f32.mrf.mxu0
        %v1783 = vadd.f32 0.0, %v1782
        %v1784 = vpop.f32.mrf.mxu0
        %1785 = vdwg.mxu0
        %v1786 = vmax.f32 %v1628, 1e-24
        %v1787 = vmax.f32 %v1633, 1e-24
        %v1788 = vmax.f32 %v1638, 1e-24
        %v1789 = vmax.f32 %v1643, 1e-24
        %v1790 = vmax.f32 %v1648, 1e-24
        %v1791 = vmax.f32 %v1653, 1e-24
        %v1792 = vmax.f32 %v1658, 1e-24
        %v1793 = vmax.f32 %v1663, 1e-24
        %v1794 = vmax.f32 %v1668, 1e-24
        %v1795 = vmax.f32 %v1673, 1e-24
        %v1796 = vmax.f32 %v1678, 1e-24
        %v1797 = vmax.f32 %v1683, 1e-24
        %v1798 = vmax.f32 %v1688, 1e-24
        %v1799 = vmax.f32 %v1693, 1e-24
        %v1800 = vmax.f32 %v1698, 1e-24
        %v1801 = vmax.f32 %v1703, 1e-24
        %v1802 = vmax.f32 %v1708, 1e-24
        %v1803 = vmax.f32 %v1713, 1e-24
        %v1804 = vmax.f32 %v1718, 1e-24
        %v1805 = vmax.f32 %v1723, 1e-24
        %v1806 = vmax.f32 %v1728, 1e-24
        %v1807 = vmax.f32 %v1733, 1e-24
        %v1808 = vmax.f32 %v1738, 1e-24
        %v1809 = vmax.f32 %v1743, 1e-24
        %v1810 = vmax.f32 %v1748, 1e-24
        %v1811 = vmax.f32 %v1753, 1e-24
        %v1812 = vmax.f32 %v1758, 1e-24
        %v1813 = vmax.f32 %v1763, 1e-24
        %v1814 = vmax.f32 %v1768, 1e-24
        %v1815 = vmax.f32 %v1773, 1e-24
        %v1816 = vmax.f32 %v1778, 1e-24
        %v1817 = vmax.f32 %v1783, 1e-24
        %v1818 = vrsqrt.pop %v1786
        %v1819 = vrsqrt.pop %v1787
        %v1820 = vrsqrt.pop %v1788
        %v1821 = vrsqrt.pop %v1789
        %v1822 = vrsqrt.pop %v1790
        %v1823 = vrsqrt.pop %v1791
        %v1824 = vrsqrt.pop %v1792
        %v1825 = vrsqrt.pop %v1793
        %v1826 = vrsqrt.pop %v1794
        %v1827 = vrsqrt.pop %v1795
        %v1828 = vrsqrt.pop %v1796
        %v1829 = vrsqrt.pop %v1797
        %v1830 = vrsqrt.pop %v1798
        %v1831 = vrsqrt.pop %v1799
        %v1832 = vrsqrt.pop %v1800
        %v1833 = vrsqrt.pop %v1801
        %v1834 = vrsqrt.pop %v1802
        %v1835 = vrsqrt.pop %v1803
        %v1836 = vrsqrt.pop %v1804
        %v1837 = vrsqrt.pop %v1805
        %v1838 = vrsqrt.pop %v1806
        %v1839 = vrsqrt.pop %v1807
        %v1840 = vrsqrt.pop %v1808
        %v1841 = vrsqrt.pop %v1809
        %v1842 = vrsqrt.pop %v1810
        %v1843 = vrsqrt.pop %v1811
        %v1844 = vrsqrt.pop %v1812
        %v1845 = vrsqrt.pop %v1813
        %v1846 = vrsqrt.pop %v1814
        %v1847 = vrsqrt.pop %v1815
        %v1848 = vrsqrt.pop %v1816
        %v1849 = vrsqrt.pop %v1817
        %v1850 = vmul.f32 %v1355, %v1818
        %v1851 = vmul.f32 %v1360, %v1819
        %v1852 = vmul.f32 %v1365, %v1820
        %v1853 = vmul.f32 %v1370, %v1821
        %v1854 = vmul.f32 %v1375, %v1822
        %v1855 = vmul.f32 %v1380, %v1823
        %v1856 = vmul.f32 %v1385, %v1824
        %v1857 = vmul.f32 %v1390, %v1825
        %v1858 = vmul.f32 %v1395, %v1826
        %v1859 = vmul.f32 %v1400, %v1827
        %v1860 = vmul.f32 %v1405, %v1828
        %v1861 = vmul.f32 %v1410, %v1829
        %v1862 = vmul.f32 %v1415, %v1830
        %v1863 = vmul.f32 %v1420, %v1831
        %v1864 = vmul.f32 %v1425, %v1832
        %v1865 = vmul.f32 %v1430, %v1833
        %v1866 = vmul.f32 %v1435, %v1834
        %v1867 = vmul.f32 %v1440, %v1835
        %v1868 = vmul.f32 %v1445, %v1836
        %v1869 = vmul.f32 %v1450, %v1837
        %v1870 = vmul.f32 %v1455, %v1838
        %v1871 = vmul.f32 %v1460, %v1839
        %v1872 = vmul.f32 %v1465, %v1840
        %v1873 = vmul.f32 %v1470, %v1841
        %v1874 = vmul.f32 %v1475, %v1842
        %v1875 = vmul.f32 %v1480, %v1843
        %v1876 = vmul.f32 %v1485, %v1844
        %v1877 = vmul.f32 %v1490, %v1845
        %v1878 = vmul.f32 %v1495, %v1846
        %v1879 = vmul.f32 %v1500, %v1847
        %v1880 = vmul.f32 %v1505, %v1848
        %v1881 = vmul.f32 %v1510, %v1849
        %v1882 = vld [vmem:[%s5] sm:$0xff]
        %v1883 = vld [vmem:[%s5 + $0x8] sm:$0xff]
        %v1884 = vld [vmem:[%s5 + $0x10] sm:$0xff]
        %v1885 = vld [vmem:[%s5 + $0x18] sm:$0xff]
        %v1886 = vld [vmem:[%s5 + $0x20] sm:$0xff]
        %v1887 = vld [vmem:[%s5 + $0x28] sm:$0xff]
        %v1888 = vld [vmem:[%s5 + $0x30] sm:$0xff]
        %v1889 = vld [vmem:[%s5 + $0x38] sm:$0xff]
        %v1890 = vld [vmem:[%s5 + $0x40] sm:$0xff]
        %v1891 = vld [vmem:[%s5 + $0x48] sm:$0xff]
        %v1892 = vld [vmem:[%s5 + $0x50] sm:$0xff]
        %v1893 = vld [vmem:[%s5 + $0x58] sm:$0xff]
        %v1894 = vld [vmem:[%s5 + $0x60] sm:$0xff]
        %v1895 = vld [vmem:[%s5 + $0x68] sm:$0xff]
        %v1896 = vld [vmem:[%s5 + $0x70] sm:$0xff]
        %v1897 = vld [vmem:[%s5 + $0x78] sm:$0xff]
        %v1898 = vld [vmem:[%s7] sm:$0x1]
        %v1900 = vlaneseq
        %v1901 = vshrl.u32 %v1900, 7
        %v1902 = vsub.s32 0, %v1901
        %v1903 = vrot.slane %v1898, %v1902
        %1905 = vmatprep.subr.mxu0 0.0
        %1906 = vmatpush1.msra.mxu0 %v1897
        %1907 = vmatprep.subr.mxu0 0.0
        %1908 = vmatpush1.msra.mxu0 %v1896
        %1909 = vmatprep.subr.mxu0 0.0
        %1910 = vmatpush1.msra.mxu0 %v1895
        %1911 = vmatprep.subr.mxu0 0.0
        %1912 = vmatpush1.msra.mxu0 %v1894
        %1913 = vmatprep.subr.mxu0 0.0
        %1914 = vmatpush1.msra.mxu0 %v1893
        %1915 = vmatprep.subr.mxu0 0.0
        %1916 = vmatpush1.msra.mxu0 %v1892
        %1917 = vmatprep.subr.mxu0 0.0
        %1918 = vmatpush1.msra.mxu0 %v1891
        %1919 = vmatprep.subr.mxu0 0.0
        %1920 = vmatpush1.msra.mxu0 %v1890
        %1921 = vmatprep.subr.mxu0 0.0
        %1922 = vmatpush1.msra.mxu0 %v1889
        %1923 = vmatprep.subr.mxu0 0.0
        %1924 = vmatpush1.msra.mxu0 %v1888
        %1925 = vmatprep.subr.mxu0 0.0
        %1926 = vmatpush1.msra.mxu0 %v1887
        %1927 = vmatprep.subr.mxu0 0.0
        %1928 = vmatpush1.msra.mxu0 %v1886
        %1929 = vmatprep.subr.mxu0 0.0
        %1930 = vmatpush1.msra.mxu0 %v1885
        %1931 = vmatprep.subr.mxu0 0.0
        %1932 = vmatpush1.msra.mxu0 %v1884
        %1933 = vmatprep.subr.mxu0 0.0
        %1934 = vmatpush1.msra.mxu0 %v1883
        %1935 = vmatprep.subr.mxu0 0.0
        %1936 = vmatpush1.msra.mxu0 %v1882
        %1937 = vmatprep.subr.mxu0 0.0
        %1938 = vmatpush2.msra.mxu0 0.0
        %1939 = vmatprep.subr.mxu0 0.0
        %1940 = vmatpush2.msra.mxu0 0.0
        %1941 = vmatprep.subr.mxu0 0.0
        %1942 = vmatpush2.msra.mxu0 0.0
        %1943 = vmatprep.subr.mxu0 0.0
        %1944 = vmatpush2.msra.mxu0 0.0
        %1945 = vmatprep.subr.mxu0 0.0
        %1946 = vmatpush2.msra.mxu0 0.0
        %1947 = vmatprep.subr.mxu0 0.0
        %1948 = vmatpush2.msra.mxu0 0.0
        %1949 = vmatprep.subr.mxu0 0.0
        %1950 = vmatpush2.msra.mxu0 0.0
        %1951 = vmatprep.subr.mxu0 0.0
        %1952 = vmatpush2.msra.mxu0 0.0
        %1953 = vmatprep.subr.mxu0 0.0
        %1954 = vmatpush2.msra.mxu0 0.0
        %1955 = vmatprep.subr.mxu0 0.0
        %1956 = vmatpush2.msra.mxu0 0.0
        %1957 = vmatprep.subr.mxu0 0.0
        %1958 = vmatpush2.msra.mxu0 0.0
        %1959 = vmatprep.subr.mxu0 0.0
        %1960 = vmatpush2.msra.mxu0 0.0
        %1961 = vmatprep.subr.mxu0 0.0
        %1962 = vmatpush2.msra.mxu0 0.0
        %1963 = vmatprep.subr.mxu0 0.0
        %1964 = vmatpush2.msra.mxu0 0.0
        %1965 = vmatprep.subr.mxu0 0.0
        %1966 = vmatpush2.msra.mxu0 0.0
        %1967 = vmatprep.subr.mxu0 0.0
        %1968 = vmatpush2.msra.mxu0 0.0
        %1969 = vmatprep.mubr.f32.mxu0 0.0
        %1970 = vmatmul.mubr.f32.gmra.mxu0 %v1850
        %v1971 = vpop.f32.mrf.mxu0
        %v1972 = vadd.f32 %v1903, %v1971
        %v1973 = vpop.f32.mrf.mxu0
        %1974 = vmatprep.mubr.f32.mxu0 0.0
        %1975 = vmatmul.mubr.f32.gmra.mxu0 %v1851
        %v1976 = vpop.f32.mrf.mxu0
        %v1977 = vadd.f32 %v1903, %v1976
        %v1978 = vpop.f32.mrf.mxu0
        %1979 = vmatprep.mubr.f32.mxu0 0.0
        %1980 = vmatmul.mubr.f32.gmra.mxu0 %v1852
        %v1981 = vpop.f32.mrf.mxu0
        %v1982 = vadd.f32 %v1903, %v1981
        %v1983 = vpop.f32.mrf.mxu0
        %1984 = vmatprep.mubr.f32.mxu0 0.0
        %1985 = vmatmul.mubr.f32.gmra.mxu0 %v1853
        %v1986 = vpop.f32.mrf.mxu0
        %v1987 = vadd.f32 %v1903, %v1986
        %v1988 = vpop.f32.mrf.mxu0
        %1989 = vmatprep.mubr.f32.mxu0 0.0
        %1990 = vmatmul.mubr.f32.gmra.mxu0 %v1854
        %v1991 = vpop.f32.mrf.mxu0
        %v1992 = vadd.f32 %v1903, %v1991
        %v1993 = vpop.f32.mrf.mxu0
        %1994 = vmatprep.mubr.f32.mxu0 0.0
        %1995 = vmatmul.mubr.f32.gmra.mxu0 %v1855
        %v1996 = vpop.f32.mrf.mxu0
        %v1997 = vadd.f32 %v1903, %v1996
        %v1998 = vpop.f32.mrf.mxu0
        %1999 = vmatprep.mubr.f32.mxu0 0.0
        %2000 = vmatmul.mubr.f32.gmra.mxu0 %v1856
        %v2001 = vpop.f32.mrf.mxu0
        %v2002 = vadd.f32 %v1903, %v2001
        %v2003 = vpop.f32.mrf.mxu0
        %2004 = vmatprep.mubr.f32.mxu0 0.0
        %2005 = vmatmul.mubr.f32.gmra.mxu0 %v1857
        %v2006 = vpop.f32.mrf.mxu0
        %v2007 = vadd.f32 %v1903, %v2006
        %v2008 = vpop.f32.mrf.mxu0
        %2009 = vmatprep.mubr.f32.mxu0 0.0
        %2010 = vmatmul.mubr.f32.gmra.mxu0 %v1858
        %v2011 = vpop.f32.mrf.mxu0
        %v2012 = vadd.f32 %v1903, %v2011
        %v2013 = vpop.f32.mrf.mxu0
        %2014 = vmatprep.mubr.f32.mxu0 0.0
        %2015 = vmatmul.mubr.f32.gmra.mxu0 %v1859
        %v2016 = vpop.f32.mrf.mxu0
        %v2017 = vadd.f32 %v1903, %v2016
        %v2018 = vpop.f32.mrf.mxu0
        %2019 = vmatprep.mubr.f32.mxu0 0.0
        %2020 = vmatmul.mubr.f32.gmra.mxu0 %v1860
        %v2021 = vpop.f32.mrf.mxu0
        %v2022 = vadd.f32 %v1903, %v2021
        %v2023 = vpop.f32.mrf.mxu0
        %2024 = vmatprep.mubr.f32.mxu0 0.0
        %2025 = vmatmul.mubr.f32.gmra.mxu0 %v1861
        %v2026 = vpop.f32.mrf.mxu0
        %v2027 = vadd.f32 %v1903, %v2026
        %v2028 = vpop.f32.mrf.mxu0
        %2029 = vmatprep.mubr.f32.mxu0 0.0
        %2030 = vmatmul.mubr.f32.gmra.mxu0 %v1862
        %v2031 = vpop.f32.mrf.mxu0
        %v2032 = vadd.f32 %v1903, %v2031
        %v2033 = vpop.f32.mrf.mxu0
        %2034 = vmatprep.mubr.f32.mxu0 0.0
        %2035 = vmatmul.mubr.f32.gmra.mxu0 %v1863
        %v2036 = vpop.f32.mrf.mxu0
        %v2037 = vadd.f32 %v1903, %v2036
        %v2038 = vpop.f32.mrf.mxu0
        %2039 = vmatprep.mubr.f32.mxu0 0.0
        %2040 = vmatmul.mubr.f32.gmra.mxu0 %v1864
        %v2041 = vpop.f32.mrf.mxu0
        %v2042 = vadd.f32 %v1903, %v2041
        %v2043 = vpop.f32.mrf.mxu0
        %2044 = vmatprep.mubr.f32.mxu0 0.0
        %2045 = vmatmul.mubr.f32.gmra.mxu0 %v1865
        %v2046 = vpop.f32.mrf.mxu0
        %v2047 = vadd.f32 %v1903, %v2046
        %v2048 = vpop.f32.mrf.mxu0
        %2049 = vmatprep.mubr.f32.mxu0 0.0
        %2050 = vmatmul.mubr.f32.gmra.mxu0 %v1866
        %v2051 = vpop.f32.mrf.mxu0
        %v2052 = vadd.f32 %v1903, %v2051
        %v2053 = vpop.f32.mrf.mxu0
        %2054 = vmatprep.mubr.f32.mxu0 0.0
        %2055 = vmatmul.mubr.f32.gmra.mxu0 %v1867
        %v2056 = vpop.f32.mrf.mxu0
        %v2057 = vadd.f32 %v1903, %v2056
        %v2058 = vpop.f32.mrf.mxu0
        %2059 = vmatprep.mubr.f32.mxu0 0.0
        %2060 = vmatmul.mubr.f32.gmra.mxu0 %v1868
        %v2061 = vpop.f32.mrf.mxu0
        %v2062 = vadd.f32 %v1903, %v2061
        %v2063 = vpop.f32.mrf.mxu0
        %2064 = vmatprep.mubr.f32.mxu0 0.0
        %2065 = vmatmul.mubr.f32.gmra.mxu0 %v1869
        %v2066 = vpop.f32.mrf.mxu0
        %v2067 = vadd.f32 %v1903, %v2066
        %v2068 = vpop.f32.mrf.mxu0
        %2069 = vmatprep.mubr.f32.mxu0 0.0
        %2070 = vmatmul.mubr.f32.gmra.mxu0 %v1870
        %v2071 = vpop.f32.mrf.mxu0
        %v2072 = vadd.f32 %v1903, %v2071
        %v2073 = vpop.f32.mrf.mxu0
        %2074 = vmatprep.mubr.f32.mxu0 0.0
        %2075 = vmatmul.mubr.f32.gmra.mxu0 %v1871
        %v2076 = vpop.f32.mrf.mxu0
        %v2077 = vadd.f32 %v1903, %v2076
        %v2078 = vpop.f32.mrf.mxu0
        %2079 = vmatprep.mubr.f32.mxu0 0.0
        %2080 = vmatmul.mubr.f32.gmra.mxu0 %v1872
        %v2081 = vpop.f32.mrf.mxu0
        %v2082 = vadd.f32 %v1903, %v2081
        %v2083 = vpop.f32.mrf.mxu0
        %2084 = vmatprep.mubr.f32.mxu0 0.0
        %2085 = vmatmul.mubr.f32.gmra.mxu0 %v1873
        %v2086 = vpop.f32.mrf.mxu0
        %v2087 = vadd.f32 %v1903, %v2086
        %v2088 = vpop.f32.mrf.mxu0
        %2089 = vmatprep.mubr.f32.mxu0 0.0
        %2090 = vmatmul.mubr.f32.gmra.mxu0 %v1874
        %v2091 = vpop.f32.mrf.mxu0
        %v2092 = vadd.f32 %v1903, %v2091
        %v2093 = vpop.f32.mrf.mxu0
        %2094 = vmatprep.mubr.f32.mxu0 0.0
        %2095 = vmatmul.mubr.f32.gmra.mxu0 %v1875
        %v2096 = vpop.f32.mrf.mxu0
        %v2097 = vadd.f32 %v1903, %v2096
        %v2098 = vpop.f32.mrf.mxu0
        %2099 = vmatprep.mubr.f32.mxu0 0.0
        %2100 = vmatmul.mubr.f32.gmra.mxu0 %v1876
        %v2101 = vpop.f32.mrf.mxu0
        %v2102 = vadd.f32 %v1903, %v2101
        %v2103 = vpop.f32.mrf.mxu0
        %2104 = vmatprep.mubr.f32.mxu0 0.0
        %2105 = vmatmul.mubr.f32.gmra.mxu0 %v1877
        %v2106 = vpop.f32.mrf.mxu0
        %v2107 = vadd.f32 %v1903, %v2106
        %v2108 = vpop.f32.mrf.mxu0
        %2109 = vmatprep.mubr.f32.mxu0 0.0
        %2110 = vmatmul.mubr.f32.gmra.mxu0 %v1878
        %v2111 = vpop.f32.mrf.mxu0
        %v2112 = vadd.f32 %v1903, %v2111
        %v2113 = vpop.f32.mrf.mxu0
        %2114 = vmatprep.mubr.f32.mxu0 0.0
        %2115 = vmatmul.mubr.f32.gmra.mxu0 %v1879
        %v2116 = vpop.f32.mrf.mxu0
        %v2117 = vadd.f32 %v1903, %v2116
        %v2118 = vpop.f32.mrf.mxu0
        %2119 = vmatprep.mubr.f32.mxu0 0.0
        %2120 = vmatmul.mubr.f32.gmra.mxu0 %v1880
        %v2121 = vpop.f32.mrf.mxu0
        %v2122 = vadd.f32 %v1903, %v2121
        %v2123 = vpop.f32.mrf.mxu0
        %2124 = vmatprep.mubr.f32.mxu0 0.0
        %2125 = vmatmul.mubr.f32.gmra.mxu0 %v1881
        %v2126 = vpop.f32.mrf.mxu0
        %v2127 = vadd.f32 %v1903, %v2126
        %v2128 = vpop.f32.mrf.mxu0
        %2129 = vdwg.mxu0
        %2130 = vst [vmem:[%s315] sm:$0xff] %v1972
        %2131 = vst [vmem:[%s315 + $0x8] sm:$0xff] %v1977
        %2132 = vst [vmem:[%s315 + $0x10] sm:$0xff] %v1982
        %2133 = vst [vmem:[%s315 + $0x18] sm:$0xff] %v1987
        %2134 = vst [vmem:[%s315 + $0x20] sm:$0xff] %v1992
        %2135 = vst [vmem:[%s315 + $0x28] sm:$0xff] %v1997
        %2136 = vst [vmem:[%s315 + $0x30] sm:$0xff] %v2002
        %2137 = vst [vmem:[%s315 + $0x38] sm:$0xff] %v2007
        %2138 = vst [vmem:[%s315 + $0x40] sm:$0xff] %v2012
        %2139 = vst [vmem:[%s315 + $0x48] sm:$0xff] %v2017
        %2140 = vst [vmem:[%s315 + $0x50] sm:$0xff] %v2022
        %2141 = vst [vmem:[%s315 + $0x58] sm:$0xff] %v2027
        %2142 = vst [vmem:[%s315 + $0x60] sm:$0xff] %v2032
        %2143 = vst [vmem:[%s315 + $0x68] sm:$0xff] %v2037
        %2144 = vst [vmem:[%s315 + $0x70] sm:$0xff] %v2042
        %2145 = vst [vmem:[%s315 + $0x78] sm:$0xff] %v2047
        %2146 = vst [vmem:[%s315 + $0x80] sm:$0xff] %v2052
        %2147 = vst [vmem:[%s315 + $0x88] sm:$0xff] %v2057
        %2148 = vst [vmem:[%s315 + $0x90] sm:$0xff] %v2062
        %2149 = vst [vmem:[%s315 + $0x98] sm:$0xff] %v2067
        %2150 = vst [vmem:[%s315 + $0xa0] sm:$0xff] %v2072
        %2151 = vst [vmem:[%s315 + $0xa8] sm:$0xff] %v2077
        %2152 = vst [vmem:[%s315 + $0xb0] sm:$0xff] %v2082
        %2153 = vst [vmem:[%s315 + $0xb8] sm:$0xff] %v2087
        %2154 = vst [vmem:[%s315 + $0xc0] sm:$0xff] %v2092
        %2155 = vst [vmem:[%s315 + $0xc8] sm:$0xff] %v2097
        %2156 = vst [vmem:[%s315 + $0xd0] sm:$0xff] %v2102
        %2157 = vst [vmem:[%s315 + $0xd8] sm:$0xff] %v2107
        %2158 = vst [vmem:[%s315 + $0xe0] sm:$0xff] %v2112
        %2159 = vst [vmem:[%s315 + $0xe8] sm:$0xff] %v2117
        %2160 = vst [vmem:[%s315 + $0xf0] sm:$0xff] %v2122
        %2161 = vst [vmem:[%s315 + $0xf8] sm:$0xff] %v2127
        %s2162 = sand.u32 %s208, 1
        %s2163 = scalar_lea.sflag [#allocation3], %s2162
        %s2164 = sand.u32 %s208, 1
        %s2165 = smul.addr %s2164, 256
        %s2166 = scalar_lea.vmem [#allocation2], %s2165
        // Predicated region
        $region53: #{tpu_custom_call.1} parent=51 // pred_check
          %p2167 = pneg %p218
        $region54: #{tpu_custom_call.1} parent=51 // pred_check_branch
          %2169 = sbr.rel (%p2167) target = $region56
        $region55: #{tpu_custom_call.1} parent=51 // pred_region
          %s2170 = smul.u32 32, %s22
          %s2172 = ssub.s32 4096, 4096
          %2173 = vsyncadd %s2163, %s2172
          %s2174 = smul.addr %s2170, 128
          %s2175 = scalar_lea.hbm %s8, %s2174
          %s2176 = sshll.u32 %s2166, 4
          %s2177 = int_to_ptr.vmem [resolvable:$true] %s2176
          %2182 = dma.vmem_to_hbm [thread:$0]  %s2177, 4096, %s2175, %s2163, 128, 128, 8
        $region56: #{tpu_custom_call.1} parent=51 // pred_fallthru
          _
      $region52: #{tpu_custom_call.1} parent=5 // pred_fallthru
        _
      %p2183 = scmp.le.s32.totalorder 2, %s17
      // Predicated region
      $region57: #{tpu_custom_call.1} parent=5 // pred_check
        %p2184 = pneg %p2183
      $region58: #{tpu_custom_call.1} parent=5 // pred_check_branch
        %2186 = sbr.rel (%p2184) target = $region60
      $region59: #{tpu_custom_call.1} parent=5 // pred_region
        %s2187 = ssub.s32 %s17, 2
        // Predicated region
        $region61: #{tpu_custom_call.1} parent=59 // pred_check
          %p2188 = pneg %p224
        $region62: #{tpu_custom_call.1} parent=59 // pred_check_branch
          %2190 = sbr.rel (%p2188) target = $region64
        $region63: #{tpu_custom_call.1} parent=59 // pred_region
          %s2191 = sand.u32 %s209, 1
          %s2192 = scalar_lea.sflag [#allocation3], %s2191
          %s2193 = sand.u32 %s209, 1
          %s2194 = smul.addr %s2193, 256
          %s2195 = scalar_lea.vmem [#allocation2], %s2194
          %2196 = dma.done %s2192, 4096
        $region64: #{tpu_custom_call.1} parent=59 // pred_fallthru
          _
      $region60: #{tpu_custom_call.1} parent=5 // pred_fallthru
        _
    $region6: #{tpu_custom_call.1} parent=1 // loop_footer
      %s21 = sadd.s32 1, %s17
    $region7: #{tpu_custom_call.1} parent=1 // loop_footer_branch
      %16 = sbr.rel target = $region3
    $region8: #{tpu_custom_call.1} parent=1 // loop_exit
      _
    %2197 = vsyncpa [#allocation3], 1
    %s2198 = scalar_lea.sflag [#allocation3], 1
    %2199 = vsyncpa %s2198, 1

</llo_original>
